<compile_context>
chip_gen: v7x
topology: tpu7x:2x2x1
jax: 0.10.0
libtpu: 0.0.40
codegen_flags: <defaults>
</compile_context>

<pallas_src>
import functools

import jax
import jax.numpy as jnp
from jax.experimental import pallas as pl
from jax.experimental.pallas import tpu as pltpu


def _round_up(n, m):
    return ((n + m - 1) // m) * m


def _mish_f32(h, approx_recip):
    # mish(h) = h * tanh(softplus(h)); tanh(log w) = (w^2-1)/(w^2+1) with w = 1 + e^h.
    # Clamp the exponent argument: for h > 20, tanh(softplus(h)) == 1 in f32.
    z = jnp.minimum(h, 20.0)
    w = 1.0 + jnp.exp(z)          # 1 EUP transcendental per element
    w2 = w * w
    num = w2 - 1.0
    den = w2 + 1.0
    if approx_recip:
        t = num * pl.reciprocal(den, approx=True)  # EUP vrcp: divide stays off the VPU
    else:
        t = num / den
    return h * t


def mlp_kernel(x_ref, w1_ref, b1_ref, w2_ref, b2_ref, o_ref, *, approx_recip):
    # x_ref:  (tm, Fp)  row tile (lane-dense, Fp multiple of 128)
    # w1_ref: (Fp, H), b1_ref: (1, H)    -- resident across the grid
    # w2_ref: (H, Fp), b2_ref: (1, Fp)   -- resident across the grid
    # fc1 (MXU), accumulate in f32, bias in f32
    h = jnp.dot(x_ref[...], w1_ref[...], preferred_element_type=jnp.float32)
    h = h + b1_ref[...]
    # Mish (VPU + 1 EUP transcendental); dropout1 = identity (eval mode)
    h = _mish_f32(h, approx_recip)
    # fc2 (MXU) + bias; dropout2 = identity (eval mode)
    h = h.astype(w2_ref.dtype)
    y = jnp.dot(h, w2_ref[...], preferred_element_type=jnp.float32)
    y = y + b2_ref[...]
    o_ref[...] = y.astype(o_ref.dtype)


@functools.partial(jax.jit, static_argnames=("tm", "mxu_dtype", "approx_recip"))
def mlp_forward(x, w1, b1, w2, b2, *, tm=512, mxu_dtype=None, approx_recip=False):
    """x: (batch, seq, F) -> (batch, seq, F). Fused Linear-Mish-Linear (eval mode)."""
    batch, seq, F = x.shape
    Fin, H = w1.shape
    assert Fin == F and w2.shape == (H, F) and b1.shape == (H,) and b2.shape == (F,)
    M = batch * seq

    # Lane-dense feature axis + zero-padded rows for arbitrary M.
    Fp = _round_up(F, 128)
    tm_eff = min(tm, _round_up(M, 8))      # big tiles, but don't over-pad tiny inputs
    Mp = _round_up(M, tm_eff)
    n_steps = Mp // tm_eff

    x2d = jnp.pad(x.reshape(M, F), ((0, Mp - M), (0, Fp - F)))
    w1p = jnp.pad(w1, ((0, Fp - F), (0, 0)))
    w2p = jnp.pad(w2, ((0, 0), (0, Fp - F)))
    b1r = b1.reshape(1, H).astype(jnp.float32)
    b2r = jnp.pad(b2, (0, Fp - F)).reshape(1, Fp).astype(jnp.float32)

    if mxu_dtype is not None:
        # bf16 operands for the MXU: 2x throughput, half the weight/activation DMA bytes.
        x2d = x2d.astype(mxu_dtype)
        w1p = w1p.astype(mxu_dtype)
        w2p = w2p.astype(mxu_dtype)

    kernel = functools.partial(mlp_kernel, approx_recip=approx_recip)

    out2d = pl.pallas_call(
        kernel,
        out_shape=jax.ShapeDtypeStruct((Mp, Fp), x.dtype),
        grid_spec=pltpu.PrefetchScalarGridSpec(
            num_scalar_prefetch=0,
            grid=(n_steps,),
            in_specs=[
                pl.BlockSpec((tm_eff, Fp), lambda i: (i, 0)),  # x row tiles (pipelined)
                pl.BlockSpec((Fp, H), lambda i: (0, 0)),       # w1 (resident)
                pl.BlockSpec((1, H), lambda i: (0, 0)),        # b1 (resident)
                pl.BlockSpec((H, Fp), lambda i: (0, 0)),       # w2 (resident)
                pl.BlockSpec((1, Fp), lambda i: (0, 0)),       # b2 (resident)
            ],
            out_specs=pl.BlockSpec((tm_eff, Fp), lambda i: (i, 0)),
        ),
        compiler_params=pltpu.CompilerParams(
            dimension_semantics=("parallel",),        # megacore / v7x 2-TC sharding
            vmem_limit_bytes=48 * 1024 * 1024,        # headroom above the default scoped limit
        ),
    )(x2d, w1p, b1r, w2p, b2r)

    return out2d[:M, :F].reshape(batch, seq, F)


def mlp_reference(x, w1, b1, w2, b2):
    h = jnp.einsum("bsf,fh->bsh", x, w1) + b1
    h = h * jnp.tanh(jax.nn.softplus(h))
    return jnp.einsum("bsh,hf->bsf", h, w2) + b2


if __name__ == "__main__":
    # Module config: num_features=32, expansion_factor=4 -> num_hidden=128
    batch, seq = 2, 250          # 500 rows: exercises row padding
    num_features = 32
    expansion_factor = 4
    num_hidden = num_features * expansion_factor

    key = jax.random.PRNGKey(0)
    kx, kw1, kb1, kw2, kb2 = jax.random.split(key, 5)

    x = jax.random.normal(kx, (batch, seq, num_features), dtype=jnp.float32)

    # PyTorch Linear init ranges; weights stored pre-transposed as (in, out).
    bound1 = 1.0 / jnp.sqrt(num_features)
    w1 = jax.random.uniform(kw1, (num_features, num_hidden), jnp.float32, -bound1, bound1)
    b1 = jax.random.uniform(kb1, (num_hidden,), jnp.float32, -bound1, bound1)
    bound2 = 1.0 / jnp.sqrt(num_hidden)
    w2 = jax.random.uniform(kw2, (num_hidden, num_features), jnp.float32, -bound2, bound2)
    b2 = jax.random.uniform(kb2, (num_features,), jnp.float32, -bound2, bound2)

    ref = mlp_reference(x, w1, b1, w2, b2)

    # Exact (f32) path, single grid step.
    out = mlp_forward(x, w1, b1, w2, b2)
    jax.block_until_ready(out)
    assert out.shape == x.shape
    assert jnp.allclose(out, ref, atol=1e-4, rtol=1e-4), "f32 kernel mismatch vs reference"

    # Multi-step grid path (tm=128 -> 4 grid steps, padded rows in the last tile).
    out_tiled = mlp_forward(x, w1, b1, w2, b2, tm=128)
    jax.block_until_ready(out_tiled)
    assert jnp.allclose(out_tiled, ref, atol=1e-4, rtol=1e-4), "tiled kernel mismatch vs reference"

    # Fast path: bf16 MXU operands + approx reciprocal in Mish (v5e EUP relief).
    out_fast = mlp_forward(x, w1, b1, w2, b2, mxu_dtype=jnp.bfloat16, approx_recip=True)
    jax.block_until_ready(out_fast)
    assert jnp.allclose(out_fast, ref, atol=5e-2, rtol=5e-2), "bf16 kernel mismatch vs reference"

    print("KERNEL_OK")
</pallas_src>

<mosaic_0001>
module attributes {stable_mosaic.version = 11 : i64} {
  func.func @mlp_kernel(%arg0: i32, %arg1: memref<504x128xf32, #tpu.memory_space<vmem>>, %arg2: memref<128x128xf32, #tpu.memory_space<vmem>>, %arg3: memref<1x128xf32, #tpu.memory_space<vmem>>, %arg4: memref<128x128xf32, #tpu.memory_space<vmem>>, %arg5: memref<1x128xf32, #tpu.memory_space<vmem>>, %arg6: memref<504x128xf32, #tpu.memory_space<vmem>>) attributes {dimension_semantics = [#tpu.dimension_semantics<parallel>], iteration_bounds = array<i64: 1>, scalar_prefetch = 0 : i64, scratch_operands = 0 : i64, tpu.core_type = #tpu.core_type<tc>, window_params = [{transform_indices = @transform_0, window_bounds = array<i64: 504, 128>}, {pipeline_mode = #tpu.pipeline_mode<synchronous>, transform_indices = @transform_1, window_bounds = array<i64: 128, 128>}, {pipeline_mode = #tpu.pipeline_mode<synchronous>, transform_indices = @transform_2, window_bounds = array<i64: 1, 128>}, {pipeline_mode = #tpu.pipeline_mode<synchronous>, transform_indices = @transform_3, window_bounds = array<i64: 128, 128>}, {pipeline_mode = #tpu.pipeline_mode<synchronous>, transform_indices = @transform_4, window_bounds = array<i64: 1, 128>}, {transform_indices = @transform_5, window_bounds = array<i64: 504, 128>}]} {
    %c0 = arith.constant 0 : index
    %c0_0 = arith.constant 0 : index
    %0 = vector.load %arg1[%c0, %c0_0] : memref<504x128xf32, #tpu.memory_space<vmem>>, vector<504x128xf32>
    %c0_1 = arith.constant 0 : index
    %c0_2 = arith.constant 0 : index
    %1 = vector.load %arg2[%c0_1, %c0_2] : memref<128x128xf32, #tpu.memory_space<vmem>>, vector<128x128xf32>
    %cst = arith.constant dense<0.000000e+00> : vector<504x128xf32>
    %2 = tpu.matmul %0, %1, %cst {dimension_numbers = #tpu.dot_dimension_numbers<[1], [0], [0], [1], [0, 0, 1, 1], [], []>} : vector<504x128xf32>, vector<128x128xf32>, vector<504x128xf32> -> vector<504x128xf32>
    %c0_3 = arith.constant 0 : index
    %c0_4 = arith.constant 0 : index
    %3 = vector.load %arg3[%c0_3, %c0_4] : memref<1x128xf32, #tpu.memory_space<vmem>>, vector<1x128xf32>
    %4 = vector.broadcast %3 : vector<1x128xf32> to vector<504x128xf32>
    %5 = arith.addf %2, %4 : vector<504x128xf32>
    %cst_5 = arith.constant 2.000000e+01 : f32
    %6 = vector.broadcast %cst_5 : f32 to vector<504x128xf32>
    %7 = arith.minimumf %5, %6 : vector<504x128xf32>
    %8 = math.exp %7 : vector<504x128xf32>
    %cst_6 = arith.constant 1.000000e+00 : f32
    %9 = vector.broadcast %cst_6 : f32 to vector<504x128xf32>
    %10 = arith.addf %9, %8 : vector<504x128xf32>
    %11 = arith.mulf %10, %10 : vector<504x128xf32>
    %cst_7 = arith.constant 1.000000e+00 : f32
    %12 = vector.broadcast %cst_7 : f32 to vector<504x128xf32>
    %13 = arith.subf %11, %12 : vector<504x128xf32>
    %cst_8 = arith.constant 1.000000e+00 : f32
    %14 = vector.broadcast %cst_8 : f32 to vector<504x128xf32>
    %15 = arith.addf %11, %14 : vector<504x128xf32>
    %16 = arith.divf %13, %15 : vector<504x128xf32>
    %17 = arith.mulf %5, %16 : vector<504x128xf32>
    %c0_9 = arith.constant 0 : index
    %c0_10 = arith.constant 0 : index
    %18 = vector.load %arg4[%c0_9, %c0_10] : memref<128x128xf32, #tpu.memory_space<vmem>>, vector<128x128xf32>
    %cst_11 = arith.constant dense<0.000000e+00> : vector<504x128xf32>
    %19 = tpu.matmul %17, %18, %cst_11 {dimension_numbers = #tpu.dot_dimension_numbers<[1], [0], [0], [1], [0, 0, 1, 1], [], []>} : vector<504x128xf32>, vector<128x128xf32>, vector<504x128xf32> -> vector<504x128xf32>
    %c0_12 = arith.constant 0 : index
    %c0_13 = arith.constant 0 : index
    %20 = vector.load %arg5[%c0_12, %c0_13] : memref<1x128xf32, #tpu.memory_space<vmem>>, vector<1x128xf32>
    %21 = vector.broadcast %20 : vector<1x128xf32> to vector<504x128xf32>
    %22 = arith.addf %19, %21 : vector<504x128xf32>
    %c0_14 = arith.constant 0 : index
    %c0_15 = arith.constant 0 : index
    %23 = vector.load %arg6[%c0_14, %c0_15] : memref<504x128xf32, #tpu.memory_space<vmem>>, vector<504x128xf32>
    tpu.vector_store %arg6[%c0_14, %c0_15], %22 {strides = array<i32>} : memref<504x128xf32, #tpu.memory_space<vmem>>, vector<504x128xf32>,
    return
  }
  func.func @transform_0(%arg0: i32) -> (i32, i32) {
    %c0_i32 = arith.constant 0 : i32
    %c0_i32_0 = arith.constant 0 : i32
    return %arg0, %c0_i32 : i32, i32
  }
  func.func @transform_1(%arg0: i32) -> (i32, i32) {
    %c0_i32 = arith.constant 0 : i32
    %c0_i32_0 = arith.constant 0 : i32
    %c0_i32_1 = arith.constant 0 : i32
    return %c0_i32, %c0_i32_0 : i32, i32
  }
  func.func @transform_2(%arg0: i32) -> (i32, i32) {
    %c0_i32 = arith.constant 0 : i32
    %c0_i32_0 = arith.constant 0 : i32
    %c0_i32_1 = arith.constant 0 : i32
    return %c0_i32, %c0_i32_0 : i32, i32
  }
  func.func @transform_3(%arg0: i32) -> (i32, i32) {
    %c0_i32 = arith.constant 0 : i32
    %c0_i32_0 = arith.constant 0 : i32
    %c0_i32_1 = arith.constant 0 : i32
    return %c0_i32, %c0_i32_0 : i32, i32
  }
  func.func @transform_4(%arg0: i32) -> (i32, i32) {
    %c0_i32 = arith.constant 0 : i32
    %c0_i32_0 = arith.constant 0 : i32
    %c0_i32_1 = arith.constant 0 : i32
    return %c0_i32, %c0_i32_0 : i32, i32
  }
  func.func @transform_5(%arg0: i32) -> (i32, i32) {
    %c0_i32 = arith.constant 0 : i32
    %c0_i32_0 = arith.constant 0 : i32
    return %arg0, %c0_i32 : i32, i32
  }
}

</mosaic_0001>

<llo_original>
// kernel: mlp_forward.1
$region0: #{mlp_forward.1}
  #allocation0 [shape = 'u32[]', space=smem, size = 0x4, offset = 0x4, fixed_abs, tag = 'smem constant byte address 0x4 - core index']
  #allocation1 [shape = 'u32[144,128]{1,0:T(1,128)}', space=vmem, size = 0x12000, scoped, tag = 'internal scratch']
  %s0 = inlined_call_operand.vmem [shape: f32[504,128], index: 0, kind: input, shape index: {}]
  %s1 = inlined_call_operand.vmem [shape: f32[128,128], index: 1, kind: input, shape index: {}]
  %s2 = inlined_call_operand.vmem [shape: f32[1,128], index: 2, kind: input, shape index: {}]
  %s3 = inlined_call_operand.vmem [shape: f32[128,128], index: 3, kind: input, shape index: {}]
  %s4 = inlined_call_operand.vmem [shape: f32[1,128], index: 4, kind: input, shape index: {}]
  %s5 = inlined_call_operand.vmem [shape: f32[504,128], index: 5, kind: output, shape index: {}]
  %s6 = sld [smem:[#allocation0]]
  $region30: #{mlp_forward.1} parent=0
    _
  %s8 = ssub.s32 1, %s6
  %s9 = scalar_select 0, %s8, %s6
  // Predicated region
  $region2: #{mlp_forward.1} parent=0 // pred_check
    _
  $region3: #{mlp_forward.1} parent=0 // pred_check_branch
    %11 = sbr.rel (0) target = $region5
  $region4: #{mlp_forward.1} parent=0 // pred_region
    _
  $region5: #{mlp_forward.1} parent=0 // pred_fallthru
    _
  // Predicated region
  $region6: #{mlp_forward.1} parent=0 // pred_check
    _
  $region7: #{mlp_forward.1} parent=0 // pred_check_branch
    %13 = sbr.rel (0) target = $region9
  $region8: #{mlp_forward.1} parent=0 // pred_region
    _
  $region9: #{mlp_forward.1} parent=0 // pred_fallthru
    _
  // Predicated region
  $region10: #{mlp_forward.1} parent=0 // pred_check
    _
  $region11: #{mlp_forward.1} parent=0 // pred_check_branch
    %15 = sbr.rel (0) target = $region13
  $region12: #{mlp_forward.1} parent=0 // pred_region
    _
  $region13: #{mlp_forward.1} parent=0 // pred_fallthru
    _
  // Predicated region
  $region14: #{mlp_forward.1} parent=0 // pred_check
    _
  $region15: #{mlp_forward.1} parent=0 // pred_check_branch
    %17 = sbr.rel (0) target = $region17
  $region16: #{mlp_forward.1} parent=0 // pred_region
    _
  $region17: #{mlp_forward.1} parent=0 // pred_fallthru
    _
  // Predicated region
  $region18: #{mlp_forward.1} parent=0 // pred_check
    _
  $region19: #{mlp_forward.1} parent=0 // pred_check_branch
    %19 = sbr.rel (0) target = $region21
  $region20: #{mlp_forward.1} parent=0 // pred_region
    _
  $region21: #{mlp_forward.1} parent=0 // pred_fallthru
    _
  %v20 = vld [vmem:[%s0] sm:$0xff]
  %v21 = vld [vmem:[%s0 + $0x8] sm:$0xff]
  %v22 = vld [vmem:[%s0 + $0x10] sm:$0xff]
  %v23 = vld [vmem:[%s0 + $0x18] sm:$0xff]
  %v24 = vld [vmem:[%s0 + $0x20] sm:$0xff]
  %v25 = vld [vmem:[%s0 + $0x28] sm:$0xff]
  %v26 = vld [vmem:[%s0 + $0x30] sm:$0xff]
  %v27 = vld [vmem:[%s0 + $0x38] sm:$0xff]
  %v28 = vld [vmem:[%s0 + $0x40] sm:$0xff]
  %v29 = vld [vmem:[%s0 + $0x48] sm:$0xff]
  %v30 = vld [vmem:[%s0 + $0x50] sm:$0xff]
  %v31 = vld [vmem:[%s0 + $0x58] sm:$0xff]
  %v32 = vld [vmem:[%s0 + $0x60] sm:$0xff]
  %v33 = vld [vmem:[%s0 + $0x68] sm:$0xff]
  %v34 = vld [vmem:[%s0 + $0x70] sm:$0xff]
  %v35 = vld [vmem:[%s0 + $0x78] sm:$0xff]
  %v36 = vld [vmem:[%s0 + $0x80] sm:$0xff]
  %v37 = vld [vmem:[%s0 + $0x88] sm:$0xff]
  %v38 = vld [vmem:[%s0 + $0x90] sm:$0xff]
  %v39 = vld [vmem:[%s0 + $0x98] sm:$0xff]
  %v40 = vld [vmem:[%s0 + $0xa0] sm:$0xff]
  %v41 = vld [vmem:[%s0 + $0xa8] sm:$0xff]
  %v42 = vld [vmem:[%s0 + $0xb0] sm:$0xff]
  %v43 = vld [vmem:[%s0 + $0xb8] sm:$0xff]
  %v44 = vld [vmem:[%s0 + $0xc0] sm:$0xff]
  %v45 = vld [vmem:[%s0 + $0xc8] sm:$0xff]
  %v46 = vld [vmem:[%s0 + $0xd0] sm:$0xff]
  %v47 = vld [vmem:[%s0 + $0xd8] sm:$0xff]
  %v48 = vld [vmem:[%s0 + $0xe0] sm:$0xff]
  %v49 = vld [vmem:[%s0 + $0xe8] sm:$0xff]
  %v50 = vld [vmem:[%s0 + $0xf0] sm:$0xff]
  %v51 = vld [vmem:[%s0 + $0xf8] sm:$0xff]
  %v52 = vld [vmem:[%s0 + $0x100] sm:$0xff]
  %v53 = vld [vmem:[%s0 + $0x108] sm:$0xff]
  %v54 = vld [vmem:[%s0 + $0x110] sm:$0xff]
  %v55 = vld [vmem:[%s0 + $0x118] sm:$0xff]
  %v56 = vld [vmem:[%s0 + $0x120] sm:$0xff]
  %v57 = vld [vmem:[%s0 + $0x128] sm:$0xff]
  %v58 = vld [vmem:[%s0 + $0x130] sm:$0xff]
  %v59 = vld [vmem:[%s0 + $0x138] sm:$0xff]
  %v60 = vld [vmem:[%s0 + $0x140] sm:$0xff]
  %v61 = vld [vmem:[%s0 + $0x148] sm:$0xff]
  %v62 = vld [vmem:[%s0 + $0x150] sm:$0xff]
  %v63 = vld [vmem:[%s0 + $0x158] sm:$0xff]
  %v64 = vld [vmem:[%s0 + $0x160] sm:$0xff]
  %v65 = vld [vmem:[%s0 + $0x168] sm:$0xff]
  %v66 = vld [vmem:[%s0 + $0x170] sm:$0xff]
  %v67 = vld [vmem:[%s0 + $0x178] sm:$0xff]
  %v68 = vld [vmem:[%s0 + $0x180] sm:$0xff]
  %v69 = vld [vmem:[%s0 + $0x188] sm:$0xff]
  %v70 = vld [vmem:[%s0 + $0x190] sm:$0xff]
  %v71 = vld [vmem:[%s0 + $0x198] sm:$0xff]
  %v72 = vld [vmem:[%s0 + $0x1a0] sm:$0xff]
  %v73 = vld [vmem:[%s0 + $0x1a8] sm:$0xff]
  %v74 = vld [vmem:[%s0 + $0x1b0] sm:$0xff]
  %v75 = vld [vmem:[%s0 + $0x1b8] sm:$0xff]
  %v76 = vld [vmem:[%s0 + $0x1c0] sm:$0xff]
  %v77 = vld [vmem:[%s0 + $0x1c8] sm:$0xff]
  %v78 = vld [vmem:[%s0 + $0x1d0] sm:$0xff]
  %v79 = vld [vmem:[%s0 + $0x1d8] sm:$0xff]
  %v80 = vld [vmem:[%s0 + $0x1e0] sm:$0xff]
  %v81 = vld [vmem:[%s0 + $0x1e8] sm:$0xff]
  %v82 = vld [vmem:[%s0 + $0x1f0] sm:$0xff]
  %v83 = vld [vmem:[%s1] sm:$0xff]
  %v84 = vld [vmem:[%s1 + $0x8] sm:$0xff]
  %v85 = vld [vmem:[%s1 + $0x10] sm:$0xff]
  %v86 = vld [vmem:[%s1 + $0x18] sm:$0xff]
  %v87 = vld [vmem:[%s1 + $0x20] sm:$0xff]
  %v88 = vld [vmem:[%s1 + $0x28] sm:$0xff]
  %v89 = vld [vmem:[%s1 + $0x30] sm:$0xff]
  %v90 = vld [vmem:[%s1 + $0x38] sm:$0xff]
  %v91 = vld [vmem:[%s1 + $0x40] sm:$0xff]
  %v92 = vld [vmem:[%s1 + $0x48] sm:$0xff]
  %v93 = vld [vmem:[%s1 + $0x50] sm:$0xff]
  %v94 = vld [vmem:[%s1 + $0x58] sm:$0xff]
  %v95 = vld [vmem:[%s1 + $0x60] sm:$0xff]
  %v96 = vld [vmem:[%s1 + $0x68] sm:$0xff]
  %v97 = vld [vmem:[%s1 + $0x70] sm:$0xff]
  %v98 = vld [vmem:[%s1 + $0x78] sm:$0xff]
  %v99 = vld [vmem:[%s2] sm:$0x1]
  %v101 = vlaneseq
  %v102 = vshrl.u32 %v101, 7
  %v103 = vsub.s32 0, %v102
  %v104 = vrot.slane %v99, %v103
  %106 = vmatprep.subr.mxu0 0.0
  %107 = vmatpush1.msra.mxu0 %v83
  %108 = vmatprep.subr.mxu0 0.0
  %109 = vmatpush1.msra.mxu0 %v84
  %110 = vmatprep.subr.mxu0 0.0
  %111 = vmatpush1.msra.mxu0 %v85
  %112 = vmatprep.subr.mxu0 0.0
  %113 = vmatpush1.msra.mxu0 %v86
  %114 = vmatprep.subr.mxu0 0.0
  %115 = vmatpush1.msra.mxu0 %v87
  %116 = vmatprep.subr.mxu0 0.0
  %117 = vmatpush1.msra.mxu0 %v88
  %118 = vmatprep.subr.mxu0 0.0
  %119 = vmatpush1.msra.mxu0 %v89
  %120 = vmatprep.subr.mxu0 0.0
  %121 = vmatpush1.msra.mxu0 %v90
  %122 = vmatprep.subr.mxu0 0.0
  %123 = vmatpush1.msra.mxu0 %v91
  %124 = vmatprep.subr.mxu0 0.0
  %125 = vmatpush1.msra.mxu0 %v92
  %126 = vmatprep.subr.mxu0 0.0
  %127 = vmatpush1.msra.mxu0 %v93
  %128 = vmatprep.subr.mxu0 0.0
  %129 = vmatpush1.msra.mxu0 %v94
  %130 = vmatprep.subr.mxu0 0.0
  %131 = vmatpush1.msra.mxu0 %v95
  %132 = vmatprep.subr.mxu0 0.0
  %133 = vmatpush1.msra.mxu0 %v96
  %134 = vmatprep.subr.mxu0 0.0
  %135 = vmatpush1.msra.mxu0 %v97
  %136 = vmatprep.subr.mxu0 0.0
  %137 = vmatpush1.msra.mxu0 %v98
  %138 = vmatprep.subr.mxu0 0.0
  %139 = vmatpush1.msra.mxu0 0.0
  %140 = vmatprep.subr.mxu0 0.0
  %141 = vmatpush1.msra.mxu0 0.0
  %142 = vmatprep.subr.mxu0 0.0
  %143 = vmatpush1.msra.mxu0 0.0
  %144 = vmatprep.subr.mxu0 0.0
  %145 = vmatpush1.msra.mxu0 0.0
  %146 = vmatprep.subr.mxu0 0.0
  %147 = vmatpush1.msra.mxu0 0.0
  %148 = vmatprep.subr.mxu0 0.0
  %149 = vmatpush1.msra.mxu0 0.0
  %150 = vmatprep.subr.mxu0 0.0
  %151 = vmatpush1.msra.mxu0 0.0
  %152 = vmatprep.subr.mxu0 0.0
  %153 = vmatpush1.msra.mxu0 0.0
  %154 = vmatprep.subr.mxu0 0.0
  %155 = vmatpush1.msra.mxu0 0.0
  %156 = vmatprep.subr.mxu0 0.0
  %157 = vmatpush1.msra.mxu0 0.0
  %158 = vmatprep.subr.mxu0 0.0
  %159 = vmatpush1.msra.mxu0 0.0
  %160 = vmatprep.subr.mxu0 0.0
  %161 = vmatpush1.msra.mxu0 0.0
  %162 = vmatprep.subr.mxu0 0.0
  %163 = vmatpush1.msra.mxu0 0.0
  %164 = vmatprep.subr.mxu0 0.0
  %165 = vmatpush1.msra.mxu0 0.0
  %166 = vmatprep.subr.mxu0 0.0
  %167 = vmatpush1.msra.mxu0 0.0
  %168 = vmatprep.subr.mxu0 0.0
  %169 = vmatpush1.msra.mxu0 0.0
  %170 = vmatprep.mubr.f32.mxu0 0.0
  %171 = vmatmul.mubr.f32.gmra.mrb[0].mxu0 %v20
  %v172 = vpop.f32.mrb[0].mxu0
  %v173 = vadd.f32 %v104, %v172
  %v174 = vpop.f32.mrb[0].mxu0
  %175 = vmatprep.mubr.f32.mxu0 0.0
  %176 = vmatmul.mubr.f32.gmra.mrb[0].mxu0 %v21
  %v177 = vpop.f32.mrb[0].mxu0
  %v178 = vadd.f32 %v104, %v177
  %v179 = vpop.f32.mrb[0].mxu0
  %180 = vmatprep.mubr.f32.mxu0 0.0
  %181 = vmatmul.mubr.f32.gmra.mrb[0].mxu0 %v22
  %v182 = vpop.f32.mrb[0].mxu0
  %v183 = vadd.f32 %v104, %v182
  %v184 = vpop.f32.mrb[0].mxu0
  %185 = vmatprep.mubr.f32.mxu0 0.0
  %186 = vmatmul.mubr.f32.gmra.mrb[0].mxu0 %v23
  %v187 = vpop.f32.mrb[0].mxu0
  %v188 = vadd.f32 %v104, %v187
  %v189 = vpop.f32.mrb[0].mxu0
  %190 = vmatprep.mubr.f32.mxu0 0.0
  %191 = vmatmul.mubr.f32.gmra.mrb[0].mxu0 %v24
  %v192 = vpop.f32.mrb[0].mxu0
  %v193 = vadd.f32 %v104, %v192
  %v194 = vpop.f32.mrb[0].mxu0
  %195 = vmatprep.mubr.f32.mxu0 0.0
  %196 = vmatmul.mubr.f32.gmra.mrb[0].mxu0 %v25
  %v197 = vpop.f32.mrb[0].mxu0
  %v198 = vadd.f32 %v104, %v197
  %v199 = vpop.f32.mrb[0].mxu0
  %200 = vmatprep.mubr.f32.mxu0 0.0
  %201 = vmatmul.mubr.f32.gmra.mrb[0].mxu0 %v26
  %v202 = vpop.f32.mrb[0].mxu0
  %v203 = vadd.f32 %v104, %v202
  %v204 = vpop.f32.mrb[0].mxu0
  %205 = vmatprep.mubr.f32.mxu0 0.0
  %206 = vmatmul.mubr.f32.gmra.mrb[0].mxu0 %v27
  %v207 = vpop.f32.mrb[0].mxu0
  %v208 = vadd.f32 %v104, %v207
  %v209 = vpop.f32.mrb[0].mxu0
  %210 = vmatprep.mubr.f32.mxu0 0.0
  %211 = vmatmul.mubr.f32.gmra.mrb[0].mxu0 %v28
  %v212 = vpop.f32.mrb[0].mxu0
  %v213 = vadd.f32 %v104, %v212
  %v214 = vpop.f32.mrb[0].mxu0
  %215 = vmatprep.mubr.f32.mxu0 0.0
  %216 = vmatmul.mubr.f32.gmra.mrb[0].mxu0 %v29
  %v217 = vpop.f32.mrb[0].mxu0
  %v218 = vadd.f32 %v104, %v217
  %v219 = vpop.f32.mrb[0].mxu0
  %220 = vmatprep.mubr.f32.mxu0 0.0
  %221 = vmatmul.mubr.f32.gmra.mrb[0].mxu0 %v30
  %v222 = vpop.f32.mrb[0].mxu0
  %v223 = vadd.f32 %v104, %v222
  %v224 = vpop.f32.mrb[0].mxu0
  %225 = vmatprep.mubr.f32.mxu0 0.0
  %226 = vmatmul.mubr.f32.gmra.mrb[0].mxu0 %v31
  %v227 = vpop.f32.mrb[0].mxu0
  %v228 = vadd.f32 %v104, %v227
  %v229 = vpop.f32.mrb[0].mxu0
  %230 = vmatprep.mubr.f32.mxu0 0.0
  %231 = vmatmul.mubr.f32.gmra.mrb[0].mxu0 %v32
  %v232 = vpop.f32.mrb[0].mxu0
  %v233 = vadd.f32 %v104, %v232
  %v234 = vpop.f32.mrb[0].mxu0
  %235 = vmatprep.mubr.f32.mxu0 0.0
  %236 = vmatmul.mubr.f32.gmra.mrb[0].mxu0 %v33
  %v237 = vpop.f32.mrb[0].mxu0
  %v238 = vadd.f32 %v104, %v237
  %v239 = vpop.f32.mrb[0].mxu0
  %240 = vmatprep.mubr.f32.mxu0 0.0
  %241 = vmatmul.mubr.f32.gmra.mrb[0].mxu0 %v34
  %v242 = vpop.f32.mrb[0].mxu0
  %v243 = vadd.f32 %v104, %v242
  %v244 = vpop.f32.mrb[0].mxu0
  %245 = vmatprep.mubr.f32.mxu0 0.0
  %246 = vmatmul.mubr.f32.gmra.mrb[0].mxu0 %v35
  %v247 = vpop.f32.mrb[0].mxu0
  %v248 = vadd.f32 %v104, %v247
  %v249 = vpop.f32.mrb[0].mxu0
  %250 = vmatprep.mubr.f32.mxu0 0.0
  %251 = vmatmul.mubr.f32.gmra.mrb[0].mxu0 %v36
  %v252 = vpop.f32.mrb[0].mxu0
  %v253 = vadd.f32 %v104, %v252
  %v254 = vpop.f32.mrb[0].mxu0
  %255 = vmatprep.mubr.f32.mxu0 0.0
  %256 = vmatmul.mubr.f32.gmra.mrb[0].mxu0 %v37
  %v257 = vpop.f32.mrb[0].mxu0
  %v258 = vadd.f32 %v104, %v257
  %v259 = vpop.f32.mrb[0].mxu0
  %260 = vmatprep.mubr.f32.mxu0 0.0
  %261 = vmatmul.mubr.f32.gmra.mrb[0].mxu0 %v38
  %v262 = vpop.f32.mrb[0].mxu0
  %v263 = vadd.f32 %v104, %v262
  %v264 = vpop.f32.mrb[0].mxu0
  %265 = vmatprep.mubr.f32.mxu0 0.0
  %266 = vmatmul.mubr.f32.gmra.mrb[0].mxu0 %v39
  %v267 = vpop.f32.mrb[0].mxu0
  %v268 = vadd.f32 %v104, %v267
  %v269 = vpop.f32.mrb[0].mxu0
  %270 = vmatprep.mubr.f32.mxu0 0.0
  %271 = vmatmul.mubr.f32.gmra.mrb[0].mxu0 %v40
  %v272 = vpop.f32.mrb[0].mxu0
  %v273 = vadd.f32 %v104, %v272
  %v274 = vpop.f32.mrb[0].mxu0
  %275 = vmatprep.mubr.f32.mxu0 0.0
  %276 = vmatmul.mubr.f32.gmra.mrb[0].mxu0 %v41
  %v277 = vpop.f32.mrb[0].mxu0
  %v278 = vadd.f32 %v104, %v277
  %v279 = vpop.f32.mrb[0].mxu0
  %280 = vmatprep.mubr.f32.mxu0 0.0
  %281 = vmatmul.mubr.f32.gmra.mrb[0].mxu0 %v42
  %v282 = vpop.f32.mrb[0].mxu0
  %v283 = vadd.f32 %v104, %v282
  %v284 = vpop.f32.mrb[0].mxu0
  %285 = vmatprep.mubr.f32.mxu0 0.0
  %286 = vmatmul.mubr.f32.gmra.mrb[0].mxu0 %v43
  %v287 = vpop.f32.mrb[0].mxu0
  %v288 = vadd.f32 %v104, %v287
  %v289 = vpop.f32.mrb[0].mxu0
  %290 = vmatprep.mubr.f32.mxu0 0.0
  %291 = vmatmul.mubr.f32.gmra.mrb[0].mxu0 %v44
  %v292 = vpop.f32.mrb[0].mxu0
  %v293 = vadd.f32 %v104, %v292
  %v294 = vpop.f32.mrb[0].mxu0
  %295 = vmatprep.mubr.f32.mxu0 0.0
  %296 = vmatmul.mubr.f32.gmra.mrb[0].mxu0 %v45
  %v297 = vpop.f32.mrb[0].mxu0
  %v298 = vadd.f32 %v104, %v297
  %v299 = vpop.f32.mrb[0].mxu0
  %300 = vmatprep.mubr.f32.mxu0 0.0
  %301 = vmatmul.mubr.f32.gmra.mrb[0].mxu0 %v46
  %v302 = vpop.f32.mrb[0].mxu0
  %v303 = vadd.f32 %v104, %v302
  %v304 = vpop.f32.mrb[0].mxu0
  %305 = vmatprep.mubr.f32.mxu0 0.0
  %306 = vmatmul.mubr.f32.gmra.mrb[0].mxu0 %v47
  %v307 = vpop.f32.mrb[0].mxu0
  %v308 = vadd.f32 %v104, %v307
  %v309 = vpop.f32.mrb[0].mxu0
  %310 = vmatprep.mubr.f32.mxu0 0.0
  %311 = vmatmul.mubr.f32.gmra.mrb[0].mxu0 %v48
  %v312 = vpop.f32.mrb[0].mxu0
  %v313 = vadd.f32 %v104, %v312
  %v314 = vpop.f32.mrb[0].mxu0
  %315 = vmatprep.mubr.f32.mxu0 0.0
  %316 = vmatmul.mubr.f32.gmra.mrb[0].mxu0 %v49
  %v317 = vpop.f32.mrb[0].mxu0
  %v318 = vadd.f32 %v104, %v317
  %v319 = vpop.f32.mrb[0].mxu0
  %320 = vmatprep.mubr.f32.mxu0 0.0
  %321 = vmatmul.mubr.f32.gmra.mrb[0].mxu0 %v50
  %v322 = vpop.f32.mrb[0].mxu0
  %v323 = vadd.f32 %v104, %v322
  %v324 = vpop.f32.mrb[0].mxu0
  %325 = vmatprep.mubr.f32.mxu0 0.0
  %326 = vmatmul.mubr.f32.gmra.mrb[0].mxu0 %v51
  %v327 = vpop.f32.mrb[0].mxu0
  %v328 = vadd.f32 %v104, %v327
  %v329 = vpop.f32.mrb[0].mxu0
  %330 = vmatprep.mubr.f32.mxu0 0.0
  %331 = vmatmul.mubr.f32.gmra.mrb[0].mxu0 %v52
  %v332 = vpop.f32.mrb[0].mxu0
  %v333 = vadd.f32 %v104, %v332
  %v334 = vpop.f32.mrb[0].mxu0
  %335 = vmatprep.mubr.f32.mxu0 0.0
  %336 = vmatmul.mubr.f32.gmra.mrb[0].mxu0 %v53
  %v337 = vpop.f32.mrb[0].mxu0
  %v338 = vadd.f32 %v104, %v337
  %v339 = vpop.f32.mrb[0].mxu0
  %340 = vmatprep.mubr.f32.mxu0 0.0
  %341 = vmatmul.mubr.f32.gmra.mrb[0].mxu0 %v54
  %v342 = vpop.f32.mrb[0].mxu0
  %v343 = vadd.f32 %v104, %v342
  %v344 = vpop.f32.mrb[0].mxu0
  %345 = vmatprep.mubr.f32.mxu0 0.0
  %346 = vmatmul.mubr.f32.gmra.mrb[0].mxu0 %v55
  %v347 = vpop.f32.mrb[0].mxu0
  %v348 = vadd.f32 %v104, %v347
  %v349 = vpop.f32.mrb[0].mxu0
  %350 = vmatprep.mubr.f32.mxu0 0.0
  %351 = vmatmul.mubr.f32.gmra.mrb[0].mxu0 %v56
  %v352 = vpop.f32.mrb[0].mxu0
  %v353 = vadd.f32 %v104, %v352
  %v354 = vpop.f32.mrb[0].mxu0
  %355 = vmatprep.mubr.f32.mxu0 0.0
  %356 = vmatmul.mubr.f32.gmra.mrb[0].mxu0 %v57
  %v357 = vpop.f32.mrb[0].mxu0
  %v358 = vadd.f32 %v104, %v357
  %v359 = vpop.f32.mrb[0].mxu0
  %360 = vmatprep.mubr.f32.mxu0 0.0
  %361 = vmatmul.mubr.f32.gmra.mrb[0].mxu0 %v58
  %v362 = vpop.f32.mrb[0].mxu0
  %v363 = vadd.f32 %v104, %v362
  %v364 = vpop.f32.mrb[0].mxu0
  %365 = vmatprep.mubr.f32.mxu0 0.0
  %366 = vmatmul.mubr.f32.gmra.mrb[0].mxu0 %v59
  %v367 = vpop.f32.mrb[0].mxu0
  %v368 = vadd.f32 %v104, %v367
  %v369 = vpop.f32.mrb[0].mxu0
  %370 = vmatprep.mubr.f32.mxu0 0.0
  %371 = vmatmul.mubr.f32.gmra.mrb[0].mxu0 %v60
  %v372 = vpop.f32.mrb[0].mxu0
  %v373 = vadd.f32 %v104, %v372
  %v374 = vpop.f32.mrb[0].mxu0
  %375 = vmatprep.mubr.f32.mxu0 0.0
  %376 = vmatmul.mubr.f32.gmra.mrb[0].mxu0 %v61
  %v377 = vpop.f32.mrb[0].mxu0
  %v378 = vadd.f32 %v104, %v377
  %v379 = vpop.f32.mrb[0].mxu0
  %380 = vmatprep.mubr.f32.mxu0 0.0
  %381 = vmatmul.mubr.f32.gmra.mrb[0].mxu0 %v62
  %v382 = vpop.f32.mrb[0].mxu0
  %v383 = vadd.f32 %v104, %v382
  %v384 = vpop.f32.mrb[0].mxu0
  %385 = vmatprep.mubr.f32.mxu0 0.0
  %386 = vmatmul.mubr.f32.gmra.mrb[0].mxu0 %v63
  %v387 = vpop.f32.mrb[0].mxu0
  %v388 = vadd.f32 %v104, %v387
  %v389 = vpop.f32.mrb[0].mxu0
  %390 = vmatprep.mubr.f32.mxu0 0.0
  %391 = vmatmul.mubr.f32.gmra.mrb[0].mxu0 %v64
  %v392 = vpop.f32.mrb[0].mxu0
  %v393 = vadd.f32 %v104, %v392
  %v394 = vpop.f32.mrb[0].mxu0
  %395 = vmatprep.mubr.f32.mxu0 0.0
  %396 = vmatmul.mubr.f32.gmra.mrb[0].mxu0 %v65
  %v397 = vpop.f32.mrb[0].mxu0
  %v398 = vadd.f32 %v104, %v397
  %v399 = vpop.f32.mrb[0].mxu0
  %400 = vmatprep.mubr.f32.mxu0 0.0
  %401 = vmatmul.mubr.f32.gmra.mrb[0].mxu0 %v66
  %v402 = vpop.f32.mrb[0].mxu0
  %v403 = vadd.f32 %v104, %v402
  %v404 = vpop.f32.mrb[0].mxu0
  %405 = vmatprep.mubr.f32.mxu0 0.0
  %406 = vmatmul.mubr.f32.gmra.mrb[0].mxu0 %v67
  %v407 = vpop.f32.mrb[0].mxu0
  %v408 = vadd.f32 %v104, %v407
  %v409 = vpop.f32.mrb[0].mxu0
  %410 = vmatprep.mubr.f32.mxu0 0.0
  %411 = vmatmul.mubr.f32.gmra.mrb[0].mxu0 %v68
  %v412 = vpop.f32.mrb[0].mxu0
  %v413 = vadd.f32 %v104, %v412
  %v414 = vpop.f32.mrb[0].mxu0
  %415 = vmatprep.mubr.f32.mxu0 0.0
  %416 = vmatmul.mubr.f32.gmra.mrb[0].mxu0 %v69
  %v417 = vpop.f32.mrb[0].mxu0
  %v418 = vadd.f32 %v104, %v417
  %v419 = vpop.f32.mrb[0].mxu0
  %420 = vmatprep.mubr.f32.mxu0 0.0
  %421 = vmatmul.mubr.f32.gmra.mrb[0].mxu0 %v70
  %v422 = vpop.f32.mrb[0].mxu0
  %v423 = vadd.f32 %v104, %v422
  %v424 = vpop.f32.mrb[0].mxu0
  %425 = vmatprep.mubr.f32.mxu0 0.0
  %426 = vmatmul.mubr.f32.gmra.mrb[0].mxu0 %v71
  %v427 = vpop.f32.mrb[0].mxu0
  %v428 = vadd.f32 %v104, %v427
  %v429 = vpop.f32.mrb[0].mxu0
  %430 = vmatprep.mubr.f32.mxu0 0.0
  %431 = vmatmul.mubr.f32.gmra.mrb[0].mxu0 %v72
  %v432 = vpop.f32.mrb[0].mxu0
  %v433 = vadd.f32 %v104, %v432
  %v434 = vpop.f32.mrb[0].mxu0
  %435 = vmatprep.mubr.f32.mxu0 0.0
  %436 = vmatmul.mubr.f32.gmra.mrb[0].mxu0 %v73
  %v437 = vpop.f32.mrb[0].mxu0
  %v438 = vadd.f32 %v104, %v437
  %v439 = vpop.f32.mrb[0].mxu0
  %440 = vmatprep.mubr.f32.mxu0 0.0
  %441 = vmatmul.mubr.f32.gmra.mrb[0].mxu0 %v74
  %v442 = vpop.f32.mrb[0].mxu0
  %v443 = vadd.f32 %v104, %v442
  %v444 = vpop.f32.mrb[0].mxu0
  %445 = vmatprep.mubr.f32.mxu0 0.0
  %446 = vmatmul.mubr.f32.gmra.mrb[0].mxu0 %v75
  %v447 = vpop.f32.mrb[0].mxu0
  %v448 = vadd.f32 %v104, %v447
  %v449 = vpop.f32.mrb[0].mxu0
  %450 = vmatprep.mubr.f32.mxu0 0.0
  %451 = vmatmul.mubr.f32.gmra.mrb[0].mxu0 %v76
  %v452 = vpop.f32.mrb[0].mxu0
  %v453 = vadd.f32 %v104, %v452
  %v454 = vpop.f32.mrb[0].mxu0
  %455 = vmatprep.mubr.f32.mxu0 0.0
  %456 = vmatmul.mubr.f32.gmra.mrb[0].mxu0 %v77
  %v457 = vpop.f32.mrb[0].mxu0
  %v458 = vadd.f32 %v104, %v457
  %v459 = vpop.f32.mrb[0].mxu0
  %460 = vmatprep.mubr.f32.mxu0 0.0
  %461 = vmatmul.mubr.f32.gmra.mrb[0].mxu0 %v78
  %v462 = vpop.f32.mrb[0].mxu0
  %v463 = vadd.f32 %v104, %v462
  %v464 = vpop.f32.mrb[0].mxu0
  %465 = vmatprep.mubr.f32.mxu0 0.0
  %466 = vmatmul.mubr.f32.gmra.mrb[0].mxu0 %v79
  %v467 = vpop.f32.mrb[0].mxu0
  %v468 = vadd.f32 %v104, %v467
  %v469 = vpop.f32.mrb[0].mxu0
  %470 = vmatprep.mubr.f32.mxu0 0.0
  %471 = vmatmul.mubr.f32.gmra.mrb[0].mxu0 %v80
  %v472 = vpop.f32.mrb[0].mxu0
  %v473 = vadd.f32 %v104, %v472
  %v474 = vpop.f32.mrb[0].mxu0
  %475 = vmatprep.mubr.f32.mxu0 0.0
  %476 = vmatmul.mubr.f32.gmra.mrb[0].mxu0 %v81
  %v477 = vpop.f32.mrb[0].mxu0
  %v478 = vadd.f32 %v104, %v477
  %v479 = vpop.f32.mrb[0].mxu0
  %480 = vmatprep.mubr.f32.mxu0 0.0
  %481 = vmatmul.mubr.f32.gmra.mrb[0].mxu0 %v82
  %v482 = vpop.f32.mrb[0].mxu0
  %v483 = vadd.f32 %v104, %v482
  %v484 = vpop.f32.mrb[0].mxu0
  %485 = vdwg.mxu0
  %v486 = vmin.f32 %v173, 20.0
  %v487 = vmin.f32 %v178, 20.0
  %v488 = vmin.f32 %v183, 20.0
  %v489 = vmin.f32 %v188, 20.0
  %v490 = vmin.f32 %v193, 20.0
  %v491 = vmin.f32 %v198, 20.0
  %v492 = vmin.f32 %v203, 20.0
  %v493 = vmin.f32 %v208, 20.0
  %v494 = vmin.f32 %v213, 20.0
  %v495 = vmin.f32 %v218, 20.0
  %v496 = vmin.f32 %v223, 20.0
  %v497 = vmin.f32 %v228, 20.0
  %v498 = vmin.f32 %v233, 20.0
  %v499 = vmin.f32 %v238, 20.0
  %v500 = vmin.f32 %v243, 20.0
  %v501 = vmin.f32 %v248, 20.0
  %v502 = vmin.f32 %v253, 20.0
  %v503 = vmin.f32 %v258, 20.0
  %v504 = vmin.f32 %v263, 20.0
  %v505 = vmin.f32 %v268, 20.0
  %v506 = vmin.f32 %v273, 20.0
  %v507 = vmin.f32 %v278, 20.0
  %v508 = vmin.f32 %v283, 20.0
  %v509 = vmin.f32 %v288, 20.0
  %v510 = vmin.f32 %v293, 20.0
  %v511 = vmin.f32 %v298, 20.0
  %v512 = vmin.f32 %v303, 20.0
  %v513 = vmin.f32 %v308, 20.0
  %v514 = vmin.f32 %v313, 20.0
  %v515 = vmin.f32 %v318, 20.0
  %v516 = vmin.f32 %v323, 20.0
  %v517 = vmin.f32 %v328, 20.0
  %v518 = vmin.f32 %v333, 20.0
  %v519 = vmin.f32 %v338, 20.0
  %v520 = vmin.f32 %v343, 20.0
  %v521 = vmin.f32 %v348, 20.0
  %v522 = vmin.f32 %v353, 20.0
  %v523 = vmin.f32 %v358, 20.0
  %v524 = vmin.f32 %v363, 20.0
  %v525 = vmin.f32 %v368, 20.0
  %v526 = vmin.f32 %v373, 20.0
  %v527 = vmin.f32 %v378, 20.0
  %v528 = vmin.f32 %v383, 20.0
  %v529 = vmin.f32 %v388, 20.0
  %v530 = vmin.f32 %v393, 20.0
  %v531 = vmin.f32 %v398, 20.0
  %v532 = vmin.f32 %v403, 20.0
  %v533 = vmin.f32 %v408, 20.0
  %v534 = vmin.f32 %v413, 20.0
  %v535 = vmin.f32 %v418, 20.0
  %v536 = vmin.f32 %v423, 20.0
  %v537 = vmin.f32 %v428, 20.0
  %v538 = vmin.f32 %v433, 20.0
  %v539 = vmin.f32 %v438, 20.0
  %v540 = vmin.f32 %v443, 20.0
  %v541 = vmin.f32 %v448, 20.0
  %v542 = vmin.f32 %v453, 20.0
  %v543 = vmin.f32 %v458, 20.0
  %v544 = vmin.f32 %v463, 20.0
  %v545 = vmin.f32 %v468, 20.0
  %v546 = vmin.f32 %v473, 20.0
  %v547 = vmin.f32 %v478, 20.0
  %v548 = vmin.f32 %v483, 20.0
  %v549 = vmul.f32 %v486, 1.442695
  %v550 = vpow.pop %v549
  %v551 = vmul.f32 %v487, 1.442695
  %v552 = vpow.pop %v551
  %v553 = vmul.f32 %v488, 1.442695
  %v554 = vpow.pop %v553
  %v555 = vmul.f32 %v489, 1.442695
  %v556 = vpow.pop %v555
  %v557 = vmul.f32 %v490, 1.442695
  %v558 = vpow.pop %v557
  %v559 = vmul.f32 %v491, 1.442695
  %v560 = vpow.pop %v559
  %v561 = vmul.f32 %v492, 1.442695
  %v562 = vpow.pop %v561
  %v563 = vmul.f32 %v493, 1.442695
  %v564 = vpow.pop %v563
  %v565 = vmul.f32 %v494, 1.442695
  %v566 = vpow.pop %v565
  %v567 = vmul.f32 %v495, 1.442695
  %v568 = vpow.pop %v567
  %v569 = vmul.f32 %v496, 1.442695
  %v570 = vpow.pop %v569
  %v571 = vmul.f32 %v497, 1.442695
  %v572 = vpow.pop %v571
  %v573 = vmul.f32 %v498, 1.442695
  %v574 = vpow.pop %v573
  %v575 = vmul.f32 %v499, 1.442695
  %v576 = vpow.pop %v575
  %v577 = vmul.f32 %v500, 1.442695
  %v578 = vpow.pop %v577
  %v579 = vmul.f32 %v501, 1.442695
  %v580 = vpow.pop %v579
  %v581 = vmul.f32 %v502, 1.442695
  %v582 = vpow.pop %v581
  %v583 = vmul.f32 %v503, 1.442695
  %v584 = vpow.pop %v583
  %v585 = vmul.f32 %v504, 1.442695
  %v586 = vpow.pop %v585
  %v587 = vmul.f32 %v505, 1.442695
  %v588 = vpow.pop %v587
  %v589 = vmul.f32 %v506, 1.442695
  %v590 = vpow.pop %v589
  %v591 = vmul.f32 %v507, 1.442695
  %v592 = vpow.pop %v591
  %v593 = vmul.f32 %v508, 1.442695
  %v594 = vpow.pop %v593
  %v595 = vmul.f32 %v509, 1.442695
  %v596 = vpow.pop %v595
  %v597 = vmul.f32 %v510, 1.442695
  %v598 = vpow.pop %v597
  %v599 = vmul.f32 %v511, 1.442695
  %v600 = vpow.pop %v599
  %v601 = vmul.f32 %v512, 1.442695
  %v602 = vpow.pop %v601
  %v603 = vmul.f32 %v513, 1.442695
  %v604 = vpow.pop %v603
  %v605 = vmul.f32 %v514, 1.442695
  %v606 = vpow.pop %v605
  %v607 = vmul.f32 %v515, 1.442695
  %v608 = vpow.pop %v607
  %v609 = vmul.f32 %v516, 1.442695
  %v610 = vpow.pop %v609
  %v611 = vmul.f32 %v517, 1.442695
  %v612 = vpow.pop %v611
  %v613 = vmul.f32 %v518, 1.442695
  %v614 = vpow.pop %v613
  %v615 = vmul.f32 %v519, 1.442695
  %v616 = vpow.pop %v615
  %v617 = vmul.f32 %v520, 1.442695
  %v618 = vpow.pop %v617
  %v619 = vmul.f32 %v521, 1.442695
  %v620 = vpow.pop %v619
  %v621 = vmul.f32 %v522, 1.442695
  %v622 = vpow.pop %v621
  %v623 = vmul.f32 %v523, 1.442695
  %v624 = vpow.pop %v623
  %v625 = vmul.f32 %v524, 1.442695
  %v626 = vpow.pop %v625
  %v627 = vmul.f32 %v525, 1.442695
  %v628 = vpow.pop %v627
  %v629 = vmul.f32 %v526, 1.442695
  %v630 = vpow.pop %v629
  %v631 = vmul.f32 %v527, 1.442695
  %v632 = vpow.pop %v631
  %v633 = vmul.f32 %v528, 1.442695
  %v634 = vpow.pop %v633
  %v635 = vmul.f32 %v529, 1.442695
  %v636 = vpow.pop %v635
  %v637 = vmul.f32 %v530, 1.442695
  %v638 = vpow.pop %v637
  %v639 = vmul.f32 %v531, 1.442695
  %v640 = vpow.pop %v639
  %v641 = vmul.f32 %v532, 1.442695
  %v642 = vpow.pop %v641
  %v643 = vmul.f32 %v533, 1.442695
  %v644 = vpow.pop %v643
  %v645 = vmul.f32 %v534, 1.442695
  %v646 = vpow.pop %v645
  %v647 = vmul.f32 %v535, 1.442695
  %v648 = vpow.pop %v647
  %v649 = vmul.f32 %v536, 1.442695
  %v650 = vpow.pop %v649
  %v651 = vmul.f32 %v537, 1.442695
  %v652 = vpow.pop %v651
  %v653 = vmul.f32 %v538, 1.442695
  %v654 = vpow.pop %v653
  %v655 = vmul.f32 %v539, 1.442695
  %v656 = vpow.pop %v655
  %v657 = vmul.f32 %v540, 1.442695
  %v658 = vpow.pop %v657
  %v659 = vmul.f32 %v541, 1.442695
  %v660 = vpow.pop %v659
  %v661 = vmul.f32 %v542, 1.442695
  %v662 = vpow.pop %v661
  %v663 = vmul.f32 %v543, 1.442695
  %v664 = vpow.pop %v663
  %v665 = vmul.f32 %v544, 1.442695
  %v666 = vpow.pop %v665
  %v667 = vmul.f32 %v545, 1.442695
  %v668 = vpow.pop %v667
  %v669 = vmul.f32 %v546, 1.442695
  %v670 = vpow.pop %v669
  %v671 = vmul.f32 %v547, 1.442695
  %v672 = vpow.pop %v671
  %v673 = vmul.f32 %v548, 1.442695
  %v674 = vpow.pop %v673
  %v675 = vadd.f32 %v550, 1.0
  %v676 = vadd.f32 %v552, 1.0
  %v677 = vadd.f32 %v554, 1.0
  %v678 = vadd.f32 %v556, 1.0
  %v679 = vadd.f32 %v558, 1.0
  %v680 = vadd.f32 %v560, 1.0
  %v681 = vadd.f32 %v562, 1.0
  %v682 = vadd.f32 %v564, 1.0
  %v683 = vadd.f32 %v566, 1.0
  %v684 = vadd.f32 %v568, 1.0
  %v685 = vadd.f32 %v570, 1.0
  %v686 = vadd.f32 %v572, 1.0
  %v687 = vadd.f32 %v574, 1.0
  %v688 = vadd.f32 %v576, 1.0
  %v689 = vadd.f32 %v578, 1.0
  %v690 = vadd.f32 %v580, 1.0
  %v691 = vadd.f32 %v582, 1.0
  %v692 = vadd.f32 %v584, 1.0
  %v693 = vadd.f32 %v586, 1.0
  %v694 = vadd.f32 %v588, 1.0
  %v695 = vadd.f32 %v590, 1.0
  %v696 = vadd.f32 %v592, 1.0
  %v697 = vadd.f32 %v594, 1.0
  %v698 = vadd.f32 %v596, 1.0
  %v699 = vadd.f32 %v598, 1.0
  %v700 = vadd.f32 %v600, 1.0
  %v701 = vadd.f32 %v602, 1.0
  %v702 = vadd.f32 %v604, 1.0
  %v703 = vadd.f32 %v606, 1.0
  %v704 = vadd.f32 %v608, 1.0
  %v705 = vadd.f32 %v610, 1.0
  %v706 = vadd.f32 %v612, 1.0
  %v707 = vadd.f32 %v614, 1.0
  %v708 = vadd.f32 %v616, 1.0
  %v709 = vadd.f32 %v618, 1.0
  %v710 = vadd.f32 %v620, 1.0
  %v711 = vadd.f32 %v622, 1.0
  %v712 = vadd.f32 %v624, 1.0
  %v713 = vadd.f32 %v626, 1.0
  %v714 = vadd.f32 %v628, 1.0
  %v715 = vadd.f32 %v630, 1.0
  %v716 = vadd.f32 %v632, 1.0
  %v717 = vadd.f32 %v634, 1.0
  %v718 = vadd.f32 %v636, 1.0
  %v719 = vadd.f32 %v638, 1.0
  %v720 = vadd.f32 %v640, 1.0
  %v721 = vadd.f32 %v642, 1.0
  %v722 = vadd.f32 %v644, 1.0
  %v723 = vadd.f32 %v646, 1.0
  %v724 = vadd.f32 %v648, 1.0
  %v725 = vadd.f32 %v650, 1.0
  %v726 = vadd.f32 %v652, 1.0
  %v727 = vadd.f32 %v654, 1.0
  %v728 = vadd.f32 %v656, 1.0
  %v729 = vadd.f32 %v658, 1.0
  %v730 = vadd.f32 %v660, 1.0
  %v731 = vadd.f32 %v662, 1.0
  %v732 = vadd.f32 %v664, 1.0
  %v733 = vadd.f32 %v666, 1.0
  %v734 = vadd.f32 %v668, 1.0
  %v735 = vadd.f32 %v670, 1.0
  %v736 = vadd.f32 %v672, 1.0
  %v737 = vadd.f32 %v674, 1.0
  %v738 = vmul.f32 %v675, %v675
  %v739 = vmul.f32 %v676, %v676
  %v740 = vmul.f32 %v677, %v677
  %v741 = vmul.f32 %v678, %v678
  %v742 = vmul.f32 %v679, %v679
  %v743 = vmul.f32 %v680, %v680
  %v744 = vmul.f32 %v681, %v681
  %v745 = vmul.f32 %v682, %v682
  %v746 = vmul.f32 %v683, %v683
  %v747 = vmul.f32 %v684, %v684
  %v748 = vmul.f32 %v685, %v685
  %v749 = vmul.f32 %v686, %v686
  %v750 = vmul.f32 %v687, %v687
  %v751 = vmul.f32 %v688, %v688
  %v752 = vmul.f32 %v689, %v689
  %v753 = vmul.f32 %v690, %v690
  %v754 = vmul.f32 %v691, %v691
  %v755 = vmul.f32 %v692, %v692
  %v756 = vmul.f32 %v693, %v693
  %v757 = vmul.f32 %v694, %v694
  %v758 = vmul.f32 %v695, %v695
  %v759 = vmul.f32 %v696, %v696
  %v760 = vmul.f32 %v697, %v697
  %v761 = vmul.f32 %v698, %v698
  %v762 = vmul.f32 %v699, %v699
  %v763 = vmul.f32 %v700, %v700
  %v764 = vmul.f32 %v701, %v701
  %v765 = vmul.f32 %v702, %v702
  %v766 = vmul.f32 %v703, %v703
  %v767 = vmul.f32 %v704, %v704
  %v768 = vmul.f32 %v705, %v705
  %v769 = vmul.f32 %v706, %v706
  %v770 = vmul.f32 %v707, %v707
  %v771 = vmul.f32 %v708, %v708
  %v772 = vmul.f32 %v709, %v709
  %v773 = vmul.f32 %v710, %v710
  %v774 = vmul.f32 %v711, %v711
  %v775 = vmul.f32 %v712, %v712
  %v776 = vmul.f32 %v713, %v713
  %v777 = vmul.f32 %v714, %v714
  %v778 = vmul.f32 %v715, %v715
  %v779 = vmul.f32 %v716, %v716
  %v780 = vmul.f32 %v717, %v717
  %v781 = vmul.f32 %v718, %v718
  %v782 = vmul.f32 %v719, %v719
  %v783 = vmul.f32 %v720, %v720
  %v784 = vmul.f32 %v721, %v721
  %v785 = vmul.f32 %v722, %v722
  %v786 = vmul.f32 %v723, %v723
  %v787 = vmul.f32 %v724, %v724
  %v788 = vmul.f32 %v725, %v725
  %v789 = vmul.f32 %v726, %v726
  %v790 = vmul.f32 %v727, %v727
  %v791 = vmul.f32 %v728, %v728
  %v792 = vmul.f32 %v729, %v729
  %v793 = vmul.f32 %v730, %v730
  %v794 = vmul.f32 %v731, %v731
  %v795 = vmul.f32 %v732, %v732
  %v796 = vmul.f32 %v733, %v733
  %v797 = vmul.f32 %v734, %v734
  %v798 = vmul.f32 %v735, %v735
  %v799 = vmul.f32 %v736, %v736
  %v800 = vmul.f32 %v737, %v737
  %v801 = vsub.f32 %v738, 1.0
  %v802 = vsub.f32 %v739, 1.0
  %v803 = vsub.f32 %v740, 1.0
  %v804 = vsub.f32 %v741, 1.0
  %v805 = vsub.f32 %v742, 1.0
  %v806 = vsub.f32 %v743, 1.0
  %v807 = vsub.f32 %v744, 1.0
  %v808 = vsub.f32 %v745, 1.0
  %v809 = vsub.f32 %v746, 1.0
  %v810 = vsub.f32 %v747, 1.0
  %v811 = vsub.f32 %v748, 1.0
  %v812 = vsub.f32 %v749, 1.0
  %v813 = vsub.f32 %v750, 1.0
  %v814 = vsub.f32 %v751, 1.0
  %v815 = vsub.f32 %v752, 1.0
  %v816 = vsub.f32 %v753, 1.0
  %v817 = vsub.f32 %v754, 1.0
  %v818 = vsub.f32 %v755, 1.0
  %v819 = vsub.f32 %v756, 1.0
  %v820 = vsub.f32 %v757, 1.0
  %v821 = vsub.f32 %v758, 1.0
  %v822 = vsub.f32 %v759, 1.0
  %v823 = vsub.f32 %v760, 1.0
  %v824 = vsub.f32 %v761, 1.0
  %v825 = vsub.f32 %v762, 1.0
  %v826 = vsub.f32 %v763, 1.0
  %v827 = vsub.f32 %v764, 1.0
  %v828 = vsub.f32 %v765, 1.0
  %v829 = vsub.f32 %v766, 1.0
  %v830 = vsub.f32 %v767, 1.0
  %v831 = vsub.f32 %v768, 1.0
  %v832 = vsub.f32 %v769, 1.0
  %v833 = vsub.f32 %v770, 1.0
  %v834 = vsub.f32 %v771, 1.0
  %v835 = vsub.f32 %v772, 1.0
  %v836 = vsub.f32 %v773, 1.0
  %v837 = vsub.f32 %v774, 1.0
  %v838 = vsub.f32 %v775, 1.0
  %v839 = vsub.f32 %v776, 1.0
  %v840 = vsub.f32 %v777, 1.0
  %v841 = vsub.f32 %v778, 1.0
  %v842 = vsub.f32 %v779, 1.0
  %v843 = vsub.f32 %v780, 1.0
  %v844 = vsub.f32 %v781, 1.0
  %v845 = vsub.f32 %v782, 1.0
  %v846 = vsub.f32 %v783, 1.0
  %v847 = vsub.f32 %v784, 1.0
  %v848 = vsub.f32 %v785, 1.0
  %v849 = vsub.f32 %v786, 1.0
  %v850 = vsub.f32 %v787, 1.0
  %v851 = vsub.f32 %v788, 1.0
  %v852 = vsub.f32 %v789, 1.0
  %v853 = vsub.f32 %v790, 1.0
  %v854 = vsub.f32 %v791, 1.0
  %v855 = vsub.f32 %v792, 1.0
  %v856 = vsub.f32 %v793, 1.0
  %v857 = vsub.f32 %v794, 1.0
  %v858 = vsub.f32 %v795, 1.0
  %v859 = vsub.f32 %v796, 1.0
  %v860 = vsub.f32 %v797, 1.0
  %v861 = vsub.f32 %v798, 1.0
  %v862 = vsub.f32 %v799, 1.0
  %v863 = vsub.f32 %v800, 1.0
  %v864 = vadd.f32 %v738, 1.0
  %v865 = vadd.f32 %v739, 1.0
  %v866 = vadd.f32 %v740, 1.0
  %v867 = vadd.f32 %v741, 1.0
  %v868 = vadd.f32 %v742, 1.0
  %v869 = vadd.f32 %v743, 1.0
  %v870 = vadd.f32 %v744, 1.0
  %v871 = vadd.f32 %v745, 1.0
  %v872 = vadd.f32 %v746, 1.0
  %v873 = vadd.f32 %v747, 1.0
  %v874 = vadd.f32 %v748, 1.0
  %v875 = vadd.f32 %v749, 1.0
  %v876 = vadd.f32 %v750, 1.0
  %v877 = vadd.f32 %v751, 1.0
  %v878 = vadd.f32 %v752, 1.0
  %v879 = vadd.f32 %v753, 1.0
  %v880 = vadd.f32 %v754, 1.0
  %v881 = vadd.f32 %v755, 1.0
  %v882 = vadd.f32 %v756, 1.0
  %v883 = vadd.f32 %v757, 1.0
  %v884 = vadd.f32 %v758, 1.0
  %v885 = vadd.f32 %v759, 1.0
  %v886 = vadd.f32 %v760, 1.0
  %v887 = vadd.f32 %v761, 1.0
  %v888 = vadd.f32 %v762, 1.0
  %v889 = vadd.f32 %v763, 1.0
  %v890 = vadd.f32 %v764, 1.0
  %v891 = vadd.f32 %v765, 1.0
  %v892 = vadd.f32 %v766, 1.0
  %v893 = vadd.f32 %v767, 1.0
  %v894 = vadd.f32 %v768, 1.0
  %v895 = vadd.f32 %v769, 1.0
  %v896 = vadd.f32 %v770, 1.0
  %v897 = vadd.f32 %v771, 1.0
  %v898 = vadd.f32 %v772, 1.0
  %v899 = vadd.f32 %v773, 1.0
  %v900 = vadd.f32 %v774, 1.0
  %v901 = vadd.f32 %v775, 1.0
  %v902 = vadd.f32 %v776, 1.0
  %v903 = vadd.f32 %v777, 1.0
  %v904 = vadd.f32 %v778, 1.0
  %v905 = vadd.f32 %v779, 1.0
  %v906 = vadd.f32 %v780, 1.0
  %v907 = vadd.f32 %v781, 1.0
  %v908 = vadd.f32 %v782, 1.0
  %v909 = vadd.f32 %v783, 1.0
  %v910 = vadd.f32 %v784, 1.0
  %v911 = vadd.f32 %v785, 1.0
  %v912 = vadd.f32 %v786, 1.0
  %v913 = vadd.f32 %v787, 1.0
  %v914 = vadd.f32 %v788, 1.0
  %v915 = vadd.f32 %v789, 1.0
  %v916 = vadd.f32 %v790, 1.0
  %v917 = vadd.f32 %v791, 1.0
  %v918 = vadd.f32 %v792, 1.0
  %v919 = vadd.f32 %v793, 1.0
  %v920 = vadd.f32 %v794, 1.0
  %v921 = vadd.f32 %v795, 1.0
  %v922 = vadd.f32 %v796, 1.0
  %v923 = vadd.f32 %v797, 1.0
  %v924 = vadd.f32 %v798, 1.0
  %v925 = vadd.f32 %v799, 1.0
  %v926 = vadd.f32 %v800, 1.0
  %v927 = vrcp.pop %v864
  %v928 = vmul.f32 %v801, %v927
  %v929 = vrcp.pop %v865
  %v930 = vmul.f32 %v802, %v929
  %v931 = vrcp.pop %v866
  %v932 = vmul.f32 %v803, %v931
  %v933 = vrcp.pop %v867
  %v934 = vmul.f32 %v804, %v933
  %v935 = vrcp.pop %v868
  %v936 = vmul.f32 %v805, %v935
  %v937 = vrcp.pop %v869
  %v938 = vmul.f32 %v806, %v937
  %v939 = vrcp.pop %v870
  %v940 = vmul.f32 %v807, %v939
  %v941 = vrcp.pop %v871
  %v942 = vmul.f32 %v808, %v941
  %v943 = vrcp.pop %v872
  %v944 = vmul.f32 %v809, %v943
  %v945 = vrcp.pop %v873
  %v946 = vmul.f32 %v810, %v945
  %v947 = vrcp.pop %v874
  %v948 = vmul.f32 %v811, %v947
  %v949 = vrcp.pop %v875
  %v950 = vmul.f32 %v812, %v949
  %v951 = vrcp.pop %v876
  %v952 = vmul.f32 %v813, %v951
  %v953 = vrcp.pop %v877
  %v954 = vmul.f32 %v814, %v953
  %v955 = vrcp.pop %v878
  %v956 = vmul.f32 %v815, %v955
  %v957 = vrcp.pop %v879
  %v958 = vmul.f32 %v816, %v957
  %v959 = vrcp.pop %v880
  %v960 = vmul.f32 %v817, %v959
  %v961 = vrcp.pop %v881
  %v962 = vmul.f32 %v818, %v961
  %v963 = vrcp.pop %v882
  %v964 = vmul.f32 %v819, %v963
  %v965 = vrcp.pop %v883
  %v966 = vmul.f32 %v820, %v965
  %v967 = vrcp.pop %v884
  %v968 = vmul.f32 %v821, %v967
  %v969 = vrcp.pop %v885
  %v970 = vmul.f32 %v822, %v969
  %v971 = vrcp.pop %v886
  %v972 = vmul.f32 %v823, %v971
  %v973 = vrcp.pop %v887
  %v974 = vmul.f32 %v824, %v973
  %v975 = vrcp.pop %v888
  %v976 = vmul.f32 %v825, %v975
  %v977 = vrcp.pop %v889
  %v978 = vmul.f32 %v826, %v977
  %v979 = vrcp.pop %v890
  %v980 = vmul.f32 %v827, %v979
  %v981 = vrcp.pop %v891
  %v982 = vmul.f32 %v828, %v981
  %v983 = vrcp.pop %v892
  %v984 = vmul.f32 %v829, %v983
  %v985 = vrcp.pop %v893
  %v986 = vmul.f32 %v830, %v985
  %v987 = vrcp.pop %v894
  %v988 = vmul.f32 %v831, %v987
  %v989 = vrcp.pop %v895
  %v990 = vmul.f32 %v832, %v989
  %v991 = vrcp.pop %v896
  %v992 = vmul.f32 %v833, %v991
  %v993 = vrcp.pop %v897
  %v994 = vmul.f32 %v834, %v993
  %v995 = vrcp.pop %v898
  %v996 = vmul.f32 %v835, %v995
  %v997 = vrcp.pop %v899
  %v998 = vmul.f32 %v836, %v997
  %v999 = vrcp.pop %v900
  %v1000 = vmul.f32 %v837, %v999
  %v1001 = vrcp.pop %v901
  %v1002 = vmul.f32 %v838, %v1001
  %v1003 = vrcp.pop %v902
  %v1004 = vmul.f32 %v839, %v1003
  %v1005 = vrcp.pop %v903
  %v1006 = vmul.f32 %v840, %v1005
  %v1007 = vrcp.pop %v904
  %v1008 = vmul.f32 %v841, %v1007
  %v1009 = vrcp.pop %v905
  %v1010 = vmul.f32 %v842, %v1009
  %v1011 = vrcp.pop %v906
  %v1012 = vmul.f32 %v843, %v1011
  %v1013 = vrcp.pop %v907
  %v1014 = vmul.f32 %v844, %v1013
  %v1015 = vrcp.pop %v908
  %v1016 = vmul.f32 %v845, %v1015
  %v1017 = vrcp.pop %v909
  %v1018 = vmul.f32 %v846, %v1017
  %v1019 = vrcp.pop %v910
  %v1020 = vmul.f32 %v847, %v1019
  %v1021 = vrcp.pop %v911
  %v1022 = vmul.f32 %v848, %v1021
  %v1023 = vrcp.pop %v912
  %v1024 = vmul.f32 %v849, %v1023
  %v1025 = vrcp.pop %v913
  %v1026 = vmul.f32 %v850, %v1025
  %v1027 = vrcp.pop %v914
  %v1028 = vmul.f32 %v851, %v1027
  %v1029 = vrcp.pop %v915
  %v1030 = vmul.f32 %v852, %v1029
  %v1031 = vrcp.pop %v916
  %v1032 = vmul.f32 %v853, %v1031
  %v1033 = vrcp.pop %v917
  %v1034 = vmul.f32 %v854, %v1033
  %v1035 = vrcp.pop %v918
  %v1036 = vmul.f32 %v855, %v1035
  %v1037 = vrcp.pop %v919
  %v1038 = vmul.f32 %v856, %v1037
  %v1039 = vrcp.pop %v920
  %v1040 = vmul.f32 %v857, %v1039
  %v1041 = vrcp.pop %v921
  %v1042 = vmul.f32 %v858, %v1041
  %v1043 = vrcp.pop %v922
  %v1044 = vmul.f32 %v859, %v1043
  %v1045 = vrcp.pop %v923
  %v1046 = vmul.f32 %v860, %v1045
  %v1047 = vrcp.pop %v924
  %v1048 = vmul.f32 %v861, %v1047
  %v1049 = vrcp.pop %v925
  %v1050 = vmul.f32 %v862, %v1049
  %v1051 = vrcp.pop %v926
  %v1052 = vmul.f32 %v863, %v1051
  %v1053 = vmul.f32 %v173, %v928
  %v1054 = vmul.f32 %v178, %v930
  %v1055 = vmul.f32 %v183, %v932
  %v1056 = vmul.f32 %v188, %v934
  %v1057 = vmul.f32 %v193, %v936
  %v1058 = vmul.f32 %v198, %v938
  %v1059 = vmul.f32 %v203, %v940
  %v1060 = vmul.f32 %v208, %v942
  %v1061 = vmul.f32 %v213, %v944
  %v1062 = vmul.f32 %v218, %v946
  %v1063 = vmul.f32 %v223, %v948
  %v1064 = vmul.f32 %v228, %v950
  %v1065 = vmul.f32 %v233, %v952
  %v1066 = vmul.f32 %v238, %v954
  %v1067 = vmul.f32 %v243, %v956
  %v1068 = vmul.f32 %v248, %v958
  %v1069 = vmul.f32 %v253, %v960
  %v1070 = vmul.f32 %v258, %v962
  %v1071 = vmul.f32 %v263, %v964
  %v1072 = vmul.f32 %v268, %v966
  %v1073 = vmul.f32 %v273, %v968
  %v1074 = vmul.f32 %v278, %v970
  %v1075 = vmul.f32 %v283, %v972
  %v1076 = vmul.f32 %v288, %v974
  %v1077 = vmul.f32 %v293, %v976
  %v1078 = vmul.f32 %v298, %v978
  %v1079 = vmul.f32 %v303, %v980
  %v1080 = vmul.f32 %v308, %v982
  %v1081 = vmul.f32 %v313, %v984
  %v1082 = vmul.f32 %v318, %v986
  %v1083 = vmul.f32 %v323, %v988
  %v1084 = vmul.f32 %v328, %v990
  %v1085 = vmul.f32 %v333, %v992
  %v1086 = vmul.f32 %v338, %v994
  %v1087 = vmul.f32 %v343, %v996
  %v1088 = vmul.f32 %v348, %v998
  %v1089 = vmul.f32 %v353, %v1000
  %v1090 = vmul.f32 %v358, %v1002
  %v1091 = vmul.f32 %v363, %v1004
  %v1092 = vmul.f32 %v368, %v1006
  %v1093 = vmul.f32 %v373, %v1008
  %v1094 = vmul.f32 %v378, %v1010
  %v1095 = vmul.f32 %v383, %v1012
  %v1096 = vmul.f32 %v388, %v1014
  %v1097 = vmul.f32 %v393, %v1016
  %v1098 = vmul.f32 %v398, %v1018
  %v1099 = vmul.f32 %v403, %v1020
  %v1100 = vmul.f32 %v408, %v1022
  %v1101 = vmul.f32 %v413, %v1024
  %v1102 = vmul.f32 %v418, %v1026
  %v1103 = vmul.f32 %v423, %v1028
  %v1104 = vmul.f32 %v428, %v1030
  %v1105 = vmul.f32 %v433, %v1032
  %v1106 = vmul.f32 %v438, %v1034
  %v1107 = vmul.f32 %v443, %v1036
  %v1108 = vmul.f32 %v448, %v1038
  %v1109 = vmul.f32 %v453, %v1040
  %v1110 = vmul.f32 %v458, %v1042
  %v1111 = vmul.f32 %v463, %v1044
  %v1112 = vmul.f32 %v468, %v1046
  %v1113 = vmul.f32 %v473, %v1048
  %v1114 = vmul.f32 %v478, %v1050
  %v1115 = vmul.f32 %v483, %v1052
  %v1116 = vld [vmem:[%s3] sm:$0xff]
  %v1117 = vld [vmem:[%s3 + $0x8] sm:$0xff]
  %v1118 = vld [vmem:[%s3 + $0x10] sm:$0xff]
  %v1119 = vld [vmem:[%s3 + $0x18] sm:$0xff]
  %v1120 = vld [vmem:[%s3 + $0x20] sm:$0xff]
  %v1121 = vld [vmem:[%s3 + $0x28] sm:$0xff]
  %v1122 = vld [vmem:[%s3 + $0x30] sm:$0xff]
  %v1123 = vld [vmem:[%s3 + $0x38] sm:$0xff]
  %v1124 = vld [vmem:[%s3 + $0x40] sm:$0xff]
  %v1125 = vld [vmem:[%s3 + $0x48] sm:$0xff]
  %v1126 = vld [vmem:[%s3 + $0x50] sm:$0xff]
  %v1127 = vld [vmem:[%s3 + $0x58] sm:$0xff]
  %v1128 = vld [vmem:[%s3 + $0x60] sm:$0xff]
  %v1129 = vld [vmem:[%s3 + $0x68] sm:$0xff]
  %v1130 = vld [vmem:[%s3 + $0x70] sm:$0xff]
  %v1131 = vld [vmem:[%s3 + $0x78] sm:$0xff]
  %v1132 = vld [vmem:[%s4] sm:$0x1]
  %v1134 = vlaneseq
  %v1135 = vshrl.u32 %v1134, 7
  %v1136 = vsub.s32 0, %v1135
  %v1137 = vrot.slane %v1132, %v1136
  %1139 = vmatprep.subr.mxu0 0.0
  %1140 = vmatpush1.msra.mxu0 %v1116
  %1141 = vmatprep.subr.mxu0 0.0
  %1142 = vmatpush1.msra.mxu0 %v1117
  %1143 = vmatprep.subr.mxu0 0.0
  %1144 = vmatpush1.msra.mxu0 %v1118
  %1145 = vmatprep.subr.mxu0 0.0
  %1146 = vmatpush1.msra.mxu0 %v1119
  %1147 = vmatprep.subr.mxu0 0.0
  %1148 = vmatpush1.msra.mxu0 %v1120
  %1149 = vmatprep.subr.mxu0 0.0
  %1150 = vmatpush1.msra.mxu0 %v1121
  %1151 = vmatprep.subr.mxu0 0.0
  %1152 = vmatpush1.msra.mxu0 %v1122
  %1153 = vmatprep.subr.mxu0 0.0
  %1154 = vmatpush1.msra.mxu0 %v1123
  %1155 = vmatprep.subr.mxu0 0.0
  %1156 = vmatpush1.msra.mxu0 %v1124
  %1157 = vmatprep.subr.mxu0 0.0
  %1158 = vmatpush1.msra.mxu0 %v1125
  %1159 = vmatprep.subr.mxu0 0.0
  %1160 = vmatpush1.msra.mxu0 %v1126
  %1161 = vmatprep.subr.mxu0 0.0
  %1162 = vmatpush1.msra.mxu0 %v1127
  %1163 = vmatprep.subr.mxu0 0.0
  %1164 = vmatpush1.msra.mxu0 %v1128
  %1165 = vmatprep.subr.mxu0 0.0
  %1166 = vmatpush1.msra.mxu0 %v1129
  %1167 = vmatprep.subr.mxu0 0.0
  %1168 = vmatpush1.msra.mxu0 %v1130
  %1169 = vmatprep.subr.mxu0 0.0
  %1170 = vmatpush1.msra.mxu0 %v1131
  %1171 = vmatprep.subr.mxu0 0.0
  %1172 = vmatpush1.msra.mxu0 0.0
  %1173 = vmatprep.subr.mxu0 0.0
  %1174 = vmatpush1.msra.mxu0 0.0
  %1175 = vmatprep.subr.mxu0 0.0
  %1176 = vmatpush1.msra.mxu0 0.0
  %1177 = vmatprep.subr.mxu0 0.0
  %1178 = vmatpush1.msra.mxu0 0.0
  %1179 = vmatprep.subr.mxu0 0.0
  %1180 = vmatpush1.msra.mxu0 0.0
  %1181 = vmatprep.subr.mxu0 0.0
  %1182 = vmatpush1.msra.mxu0 0.0
  %1183 = vmatprep.subr.mxu0 0.0
  %1184 = vmatpush1.msra.mxu0 0.0
  %1185 = vmatprep.subr.mxu0 0.0
  %1186 = vmatpush1.msra.mxu0 0.0
  %1187 = vmatprep.subr.mxu0 0.0
  %1188 = vmatpush1.msra.mxu0 0.0
  %1189 = vmatprep.subr.mxu0 0.0
  %1190 = vmatpush1.msra.mxu0 0.0
  %1191 = vmatprep.subr.mxu0 0.0
  %1192 = vmatpush1.msra.mxu0 0.0
  %1193 = vmatprep.subr.mxu0 0.0
  %1194 = vmatpush1.msra.mxu0 0.0
  %1195 = vmatprep.subr.mxu0 0.0
  %1196 = vmatpush1.msra.mxu0 0.0
  %1197 = vmatprep.subr.mxu0 0.0
  %1198 = vmatpush1.msra.mxu0 0.0
  %1199 = vmatprep.subr.mxu0 0.0
  %1200 = vmatpush1.msra.mxu0 0.0
  %1201 = vmatprep.subr.mxu0 0.0
  %1202 = vmatpush1.msra.mxu0 0.0
  %1203 = vmatprep.mubr.f32.mxu0 0.0
  %1204 = vmatmul.mubr.f32.gmra.mrb[0].mxu0 %v1053
  %v1205 = vpop.f32.mrb[0].mxu0
  %v1206 = vadd.f32 %v1137, %v1205
  %v1207 = vpop.f32.mrb[0].mxu0
  %1208 = vmatprep.mubr.f32.mxu0 0.0
  %1209 = vmatmul.mubr.f32.gmra.mrb[0].mxu0 %v1054
  %v1210 = vpop.f32.mrb[0].mxu0
  %v1211 = vadd.f32 %v1137, %v1210
  %v1212 = vpop.f32.mrb[0].mxu0
  %1213 = vmatprep.mubr.f32.mxu0 0.0
  %1214 = vmatmul.mubr.f32.gmra.mrb[0].mxu0 %v1055
  %v1215 = vpop.f32.mrb[0].mxu0
  %v1216 = vadd.f32 %v1137, %v1215
  %v1217 = vpop.f32.mrb[0].mxu0
  %1218 = vmatprep.mubr.f32.mxu0 0.0
  %1219 = vmatmul.mubr.f32.gmra.mrb[0].mxu0 %v1056
  %v1220 = vpop.f32.mrb[0].mxu0
  %v1221 = vadd.f32 %v1137, %v1220
  %v1222 = vpop.f32.mrb[0].mxu0
  %1223 = vmatprep.mubr.f32.mxu0 0.0
  %1224 = vmatmul.mubr.f32.gmra.mrb[0].mxu0 %v1057
  %v1225 = vpop.f32.mrb[0].mxu0
  %v1226 = vadd.f32 %v1137, %v1225
  %v1227 = vpop.f32.mrb[0].mxu0
  %1228 = vmatprep.mubr.f32.mxu0 0.0
  %1229 = vmatmul.mubr.f32.gmra.mrb[0].mxu0 %v1058
  %v1230 = vpop.f32.mrb[0].mxu0
  %v1231 = vadd.f32 %v1137, %v1230
  %v1232 = vpop.f32.mrb[0].mxu0
  %1233 = vmatprep.mubr.f32.mxu0 0.0
  %1234 = vmatmul.mubr.f32.gmra.mrb[0].mxu0 %v1059
  %v1235 = vpop.f32.mrb[0].mxu0
  %v1236 = vadd.f32 %v1137, %v1235
  %v1237 = vpop.f32.mrb[0].mxu0
  %1238 = vmatprep.mubr.f32.mxu0 0.0
  %1239 = vmatmul.mubr.f32.gmra.mrb[0].mxu0 %v1060
  %v1240 = vpop.f32.mrb[0].mxu0
  %v1241 = vadd.f32 %v1137, %v1240
  %v1242 = vpop.f32.mrb[0].mxu0
  %1243 = vmatprep.mubr.f32.mxu0 0.0
  %1244 = vmatmul.mubr.f32.gmra.mrb[0].mxu0 %v1061
  %v1245 = vpop.f32.mrb[0].mxu0
  %v1246 = vadd.f32 %v1137, %v1245
  %v1247 = vpop.f32.mrb[0].mxu0
  %1248 = vmatprep.mubr.f32.mxu0 0.0
  %1249 = vmatmul.mubr.f32.gmra.mrb[0].mxu0 %v1062
  %v1250 = vpop.f32.mrb[0].mxu0
  %v1251 = vadd.f32 %v1137, %v1250
  %v1252 = vpop.f32.mrb[0].mxu0
  %1253 = vmatprep.mubr.f32.mxu0 0.0
  %1254 = vmatmul.mubr.f32.gmra.mrb[0].mxu0 %v1063
  %v1255 = vpop.f32.mrb[0].mxu0
  %v1256 = vadd.f32 %v1137, %v1255
  %v1257 = vpop.f32.mrb[0].mxu0
  %1258 = vmatprep.mubr.f32.mxu0 0.0
  %1259 = vmatmul.mubr.f32.gmra.mrb[0].mxu0 %v1064
  %v1260 = vpop.f32.mrb[0].mxu0
  %v1261 = vadd.f32 %v1137, %v1260
  %v1262 = vpop.f32.mrb[0].mxu0
  %1263 = vmatprep.mubr.f32.mxu0 0.0
  %1264 = vmatmul.mubr.f32.gmra.mrb[0].mxu0 %v1065
  %v1265 = vpop.f32.mrb[0].mxu0
  %v1266 = vadd.f32 %v1137, %v1265
  %v1267 = vpop.f32.mrb[0].mxu0
  %1268 = vmatprep.mubr.f32.mxu0 0.0
  %1269 = vmatmul.mubr.f32.gmra.mrb[0].mxu0 %v1066
  %v1270 = vpop.f32.mrb[0].mxu0
  %v1271 = vadd.f32 %v1137, %v1270
  %v1272 = vpop.f32.mrb[0].mxu0
  %1273 = vmatprep.mubr.f32.mxu0 0.0
  %1274 = vmatmul.mubr.f32.gmra.mrb[0].mxu0 %v1067
  %v1275 = vpop.f32.mrb[0].mxu0
  %v1276 = vadd.f32 %v1137, %v1275
  %v1277 = vpop.f32.mrb[0].mxu0
  %1278 = vmatprep.mubr.f32.mxu0 0.0
  %1279 = vmatmul.mubr.f32.gmra.mrb[0].mxu0 %v1068
  %v1280 = vpop.f32.mrb[0].mxu0
  %v1281 = vadd.f32 %v1137, %v1280
  %v1282 = vpop.f32.mrb[0].mxu0
  %1283 = vmatprep.mubr.f32.mxu0 0.0
  %1284 = vmatmul.mubr.f32.gmra.mrb[0].mxu0 %v1069
  %v1285 = vpop.f32.mrb[0].mxu0
  %v1286 = vadd.f32 %v1137, %v1285
  %v1287 = vpop.f32.mrb[0].mxu0
  %1288 = vmatprep.mubr.f32.mxu0 0.0
  %1289 = vmatmul.mubr.f32.gmra.mrb[0].mxu0 %v1070
  %v1290 = vpop.f32.mrb[0].mxu0
  %v1291 = vadd.f32 %v1137, %v1290
  %v1292 = vpop.f32.mrb[0].mxu0
  %1293 = vmatprep.mubr.f32.mxu0 0.0
  %1294 = vmatmul.mubr.f32.gmra.mrb[0].mxu0 %v1071
  %v1295 = vpop.f32.mrb[0].mxu0
  %v1296 = vadd.f32 %v1137, %v1295
  %v1297 = vpop.f32.mrb[0].mxu0
  %1298 = vmatprep.mubr.f32.mxu0 0.0
  %1299 = vmatmul.mubr.f32.gmra.mrb[0].mxu0 %v1072
  %v1300 = vpop.f32.mrb[0].mxu0
  %v1301 = vadd.f32 %v1137, %v1300
  %v1302 = vpop.f32.mrb[0].mxu0
  %1303 = vmatprep.mubr.f32.mxu0 0.0
  %1304 = vmatmul.mubr.f32.gmra.mrb[0].mxu0 %v1073
  %v1305 = vpop.f32.mrb[0].mxu0
  %v1306 = vadd.f32 %v1137, %v1305
  %v1307 = vpop.f32.mrb[0].mxu0
  %1308 = vmatprep.mubr.f32.mxu0 0.0
  %1309 = vmatmul.mubr.f32.gmra.mrb[0].mxu0 %v1074
  %v1310 = vpop.f32.mrb[0].mxu0
  %v1311 = vadd.f32 %v1137, %v1310
  %v1312 = vpop.f32.mrb[0].mxu0
  %1313 = vmatprep.mubr.f32.mxu0 0.0
  %1314 = vmatmul.mubr.f32.gmra.mrb[0].mxu0 %v1075
  %v1315 = vpop.f32.mrb[0].mxu0
  %v1316 = vadd.f32 %v1137, %v1315
  %v1317 = vpop.f32.mrb[0].mxu0
  %1318 = vmatprep.mubr.f32.mxu0 0.0
  %1319 = vmatmul.mubr.f32.gmra.mrb[0].mxu0 %v1076
  %v1320 = vpop.f32.mrb[0].mxu0
  %v1321 = vadd.f32 %v1137, %v1320
  %v1322 = vpop.f32.mrb[0].mxu0
  %1323 = vmatprep.mubr.f32.mxu0 0.0
  %1324 = vmatmul.mubr.f32.gmra.mrb[0].mxu0 %v1077
  %v1325 = vpop.f32.mrb[0].mxu0
  %v1326 = vadd.f32 %v1137, %v1325
  %v1327 = vpop.f32.mrb[0].mxu0
  %1328 = vmatprep.mubr.f32.mxu0 0.0
  %1329 = vmatmul.mubr.f32.gmra.mrb[0].mxu0 %v1078
  %v1330 = vpop.f32.mrb[0].mxu0
  %v1331 = vadd.f32 %v1137, %v1330
  %v1332 = vpop.f32.mrb[0].mxu0
  %1333 = vmatprep.mubr.f32.mxu0 0.0
  %1334 = vmatmul.mubr.f32.gmra.mrb[0].mxu0 %v1079
  %v1335 = vpop.f32.mrb[0].mxu0
  %v1336 = vadd.f32 %v1137, %v1335
  %v1337 = vpop.f32.mrb[0].mxu0
  %1338 = vmatprep.mubr.f32.mxu0 0.0
  %1339 = vmatmul.mubr.f32.gmra.mrb[0].mxu0 %v1080
  %v1340 = vpop.f32.mrb[0].mxu0
  %v1341 = vadd.f32 %v1137, %v1340
  %v1342 = vpop.f32.mrb[0].mxu0
  %1343 = vmatprep.mubr.f32.mxu0 0.0
  %1344 = vmatmul.mubr.f32.gmra.mrb[0].mxu0 %v1081
  %v1345 = vpop.f32.mrb[0].mxu0
  %v1346 = vadd.f32 %v1137, %v1345
  %v1347 = vpop.f32.mrb[0].mxu0
  %1348 = vmatprep.mubr.f32.mxu0 0.0
  %1349 = vmatmul.mubr.f32.gmra.mrb[0].mxu0 %v1082
  %v1350 = vpop.f32.mrb[0].mxu0
  %v1351 = vadd.f32 %v1137, %v1350
  %v1352 = vpop.f32.mrb[0].mxu0
  %1353 = vmatprep.mubr.f32.mxu0 0.0
  %1354 = vmatmul.mubr.f32.gmra.mrb[0].mxu0 %v1083
  %v1355 = vpop.f32.mrb[0].mxu0
  %v1356 = vadd.f32 %v1137, %v1355
  %v1357 = vpop.f32.mrb[0].mxu0
  %1358 = vmatprep.mubr.f32.mxu0 0.0
  %1359 = vmatmul.mubr.f32.gmra.mrb[0].mxu0 %v1084
  %v1360 = vpop.f32.mrb[0].mxu0
  %v1361 = vadd.f32 %v1137, %v1360
  %v1362 = vpop.f32.mrb[0].mxu0
  %1363 = vmatprep.mubr.f32.mxu0 0.0
  %1364 = vmatmul.mubr.f32.gmra.mrb[0].mxu0 %v1085
  %v1365 = vpop.f32.mrb[0].mxu0
  %v1366 = vadd.f32 %v1137, %v1365
  %v1367 = vpop.f32.mrb[0].mxu0
  %1368 = vmatprep.mubr.f32.mxu0 0.0
  %1369 = vmatmul.mubr.f32.gmra.mrb[0].mxu0 %v1086
  %v1370 = vpop.f32.mrb[0].mxu0
  %v1371 = vadd.f32 %v1137, %v1370
  %v1372 = vpop.f32.mrb[0].mxu0
  %1373 = vmatprep.mubr.f32.mxu0 0.0
  %1374 = vmatmul.mubr.f32.gmra.mrb[0].mxu0 %v1087
  %v1375 = vpop.f32.mrb[0].mxu0
  %v1376 = vadd.f32 %v1137, %v1375
  %v1377 = vpop.f32.mrb[0].mxu0
  %1378 = vmatprep.mubr.f32.mxu0 0.0
  %1379 = vmatmul.mubr.f32.gmra.mrb[0].mxu0 %v1088
  %v1380 = vpop.f32.mrb[0].mxu0
  %v1381 = vadd.f32 %v1137, %v1380
  %v1382 = vpop.f32.mrb[0].mxu0
  %1383 = vmatprep.mubr.f32.mxu0 0.0
  %1384 = vmatmul.mubr.f32.gmra.mrb[0].mxu0 %v1089
  %v1385 = vpop.f32.mrb[0].mxu0
  %v1386 = vadd.f32 %v1137, %v1385
  %v1387 = vpop.f32.mrb[0].mxu0
  %1388 = vmatprep.mubr.f32.mxu0 0.0
  %1389 = vmatmul.mubr.f32.gmra.mrb[0].mxu0 %v1090
  %v1390 = vpop.f32.mrb[0].mxu0
  %v1391 = vadd.f32 %v1137, %v1390
  %v1392 = vpop.f32.mrb[0].mxu0
  %1393 = vmatprep.mubr.f32.mxu0 0.0
  %1394 = vmatmul.mubr.f32.gmra.mrb[0].mxu0 %v1091
  %v1395 = vpop.f32.mrb[0].mxu0
  %v1396 = vadd.f32 %v1137, %v1395
  %v1397 = vpop.f32.mrb[0].mxu0
  %1398 = vmatprep.mubr.f32.mxu0 0.0
  %1399 = vmatmul.mubr.f32.gmra.mrb[0].mxu0 %v1092
  %v1400 = vpop.f32.mrb[0].mxu0
  %v1401 = vadd.f32 %v1137, %v1400
  %v1402 = vpop.f32.mrb[0].mxu0
  %1403 = vmatprep.mubr.f32.mxu0 0.0
  %1404 = vmatmul.mubr.f32.gmra.mrb[0].mxu0 %v1093
  %v1405 = vpop.f32.mrb[0].mxu0
  %v1406 = vadd.f32 %v1137, %v1405
  %v1407 = vpop.f32.mrb[0].mxu0
  %1408 = vmatprep.mubr.f32.mxu0 0.0
  %1409 = vmatmul.mubr.f32.gmra.mrb[0].mxu0 %v1094
  %v1410 = vpop.f32.mrb[0].mxu0
  %v1411 = vadd.f32 %v1137, %v1410
  %v1412 = vpop.f32.mrb[0].mxu0
  %1413 = vmatprep.mubr.f32.mxu0 0.0
  %1414 = vmatmul.mubr.f32.gmra.mrb[0].mxu0 %v1095
  %v1415 = vpop.f32.mrb[0].mxu0
  %v1416 = vadd.f32 %v1137, %v1415
  %v1417 = vpop.f32.mrb[0].mxu0
  %1418 = vmatprep.mubr.f32.mxu0 0.0
  %1419 = vmatmul.mubr.f32.gmra.mrb[0].mxu0 %v1096
  %v1420 = vpop.f32.mrb[0].mxu0
  %v1421 = vadd.f32 %v1137, %v1420
  %v1422 = vpop.f32.mrb[0].mxu0
  %1423 = vmatprep.mubr.f32.mxu0 0.0
  %1424 = vmatmul.mubr.f32.gmra.mrb[0].mxu0 %v1097
  %v1425 = vpop.f32.mrb[0].mxu0
  %v1426 = vadd.f32 %v1137, %v1425
  %v1427 = vpop.f32.mrb[0].mxu0
  %1428 = vmatprep.mubr.f32.mxu0 0.0
  %1429 = vmatmul.mubr.f32.gmra.mrb[0].mxu0 %v1098
  %v1430 = vpop.f32.mrb[0].mxu0
  %v1431 = vadd.f32 %v1137, %v1430
  %v1432 = vpop.f32.mrb[0].mxu0
  %1433 = vmatprep.mubr.f32.mxu0 0.0
  %1434 = vmatmul.mubr.f32.gmra.mrb[0].mxu0 %v1099
  %v1435 = vpop.f32.mrb[0].mxu0
  %v1436 = vadd.f32 %v1137, %v1435
  %v1437 = vpop.f32.mrb[0].mxu0
  %1438 = vmatprep.mubr.f32.mxu0 0.0
  %1439 = vmatmul.mubr.f32.gmra.mrb[0].mxu0 %v1100
  %v1440 = vpop.f32.mrb[0].mxu0
  %v1441 = vadd.f32 %v1137, %v1440
  %v1442 = vpop.f32.mrb[0].mxu0
  %1443 = vmatprep.mubr.f32.mxu0 0.0
  %1444 = vmatmul.mubr.f32.gmra.mrb[0].mxu0 %v1101
  %v1445 = vpop.f32.mrb[0].mxu0
  %v1446 = vadd.f32 %v1137, %v1445
  %v1447 = vpop.f32.mrb[0].mxu0
  %1448 = vmatprep.mubr.f32.mxu0 0.0
  %1449 = vmatmul.mubr.f32.gmra.mrb[0].mxu0 %v1102
  %v1450 = vpop.f32.mrb[0].mxu0
  %v1451 = vadd.f32 %v1137, %v1450
  %v1452 = vpop.f32.mrb[0].mxu0
  %1453 = vmatprep.mubr.f32.mxu0 0.0
  %1454 = vmatmul.mubr.f32.gmra.mrb[0].mxu0 %v1103
  %v1455 = vpop.f32.mrb[0].mxu0
  %v1456 = vadd.f32 %v1137, %v1455
  %v1457 = vpop.f32.mrb[0].mxu0
  %1458 = vmatprep.mubr.f32.mxu0 0.0
  %1459 = vmatmul.mubr.f32.gmra.mrb[0].mxu0 %v1104
  %v1460 = vpop.f32.mrb[0].mxu0
  %v1461 = vadd.f32 %v1137, %v1460
  %v1462 = vpop.f32.mrb[0].mxu0
  %1463 = vmatprep.mubr.f32.mxu0 0.0
  %1464 = vmatmul.mubr.f32.gmra.mrb[0].mxu0 %v1105
  %v1465 = vpop.f32.mrb[0].mxu0
  %v1466 = vadd.f32 %v1137, %v1465
  %v1467 = vpop.f32.mrb[0].mxu0
  %1468 = vmatprep.mubr.f32.mxu0 0.0
  %1469 = vmatmul.mubr.f32.gmra.mrb[0].mxu0 %v1106
  %v1470 = vpop.f32.mrb[0].mxu0
  %v1471 = vadd.f32 %v1137, %v1470
  %v1472 = vpop.f32.mrb[0].mxu0
  %1473 = vmatprep.mubr.f32.mxu0 0.0
  %1474 = vmatmul.mubr.f32.gmra.mrb[0].mxu0 %v1107
  %v1475 = vpop.f32.mrb[0].mxu0
  %v1476 = vadd.f32 %v1137, %v1475
  %v1477 = vpop.f32.mrb[0].mxu0
  %1478 = vmatprep.mubr.f32.mxu0 0.0
  %1479 = vmatmul.mubr.f32.gmra.mrb[0].mxu0 %v1108
  %v1480 = vpop.f32.mrb[0].mxu0
  %v1481 = vadd.f32 %v1137, %v1480
  %v1482 = vpop.f32.mrb[0].mxu0
  %1483 = vmatprep.mubr.f32.mxu0 0.0
  %1484 = vmatmul.mubr.f32.gmra.mrb[0].mxu0 %v1109
  %v1485 = vpop.f32.mrb[0].mxu0
  %v1486 = vadd.f32 %v1137, %v1485
  %v1487 = vpop.f32.mrb[0].mxu0
  %1488 = vmatprep.mubr.f32.mxu0 0.0
  %1489 = vmatmul.mubr.f32.gmra.mrb[0].mxu0 %v1110
  %v1490 = vpop.f32.mrb[0].mxu0
  %v1491 = vadd.f32 %v1137, %v1490
  %v1492 = vpop.f32.mrb[0].mxu0
  %1493 = vmatprep.mubr.f32.mxu0 0.0
  %1494 = vmatmul.mubr.f32.gmra.mrb[0].mxu0 %v1111
  %v1495 = vpop.f32.mrb[0].mxu0
  %v1496 = vadd.f32 %v1137, %v1495
  %v1497 = vpop.f32.mrb[0].mxu0
  %1498 = vmatprep.mubr.f32.mxu0 0.0
  %1499 = vmatmul.mubr.f32.gmra.mrb[0].mxu0 %v1112
  %v1500 = vpop.f32.mrb[0].mxu0
  %v1501 = vadd.f32 %v1137, %v1500
  %v1502 = vpop.f32.mrb[0].mxu0
  %1503 = vmatprep.mubr.f32.mxu0 0.0
  %1504 = vmatmul.mubr.f32.gmra.mrb[0].mxu0 %v1113
  %v1505 = vpop.f32.mrb[0].mxu0
  %v1506 = vadd.f32 %v1137, %v1505
  %v1507 = vpop.f32.mrb[0].mxu0
  %1508 = vmatprep.mubr.f32.mxu0 0.0
  %1509 = vmatmul.mubr.f32.gmra.mrb[0].mxu0 %v1114
  %v1510 = vpop.f32.mrb[0].mxu0
  %v1511 = vadd.f32 %v1137, %v1510
  %v1512 = vpop.f32.mrb[0].mxu0
  %1513 = vmatprep.mubr.f32.mxu0 0.0
  %1514 = vmatmul.mubr.f32.gmra.mrb[0].mxu0 %v1115
  %v1515 = vpop.f32.mrb[0].mxu0
  %v1516 = vadd.f32 %v1137, %v1515
  %v1517 = vpop.f32.mrb[0].mxu0
  %1518 = vdwg.mxu0
  %1519 = vst [vmem:[%s5] sm:$0xff] %v1206
  %1520 = vst [vmem:[%s5 + $0x8] sm:$0xff] %v1211
  %1521 = vst [vmem:[%s5 + $0x10] sm:$0xff] %v1216
  %1522 = vst [vmem:[%s5 + $0x18] sm:$0xff] %v1221
  %1523 = vst [vmem:[%s5 + $0x20] sm:$0xff] %v1226
  %1524 = vst [vmem:[%s5 + $0x28] sm:$0xff] %v1231
  %1525 = vst [vmem:[%s5 + $0x30] sm:$0xff] %v1236
  %1526 = vst [vmem:[%s5 + $0x38] sm:$0xff] %v1241
  %1527 = vst [vmem:[%s5 + $0x40] sm:$0xff] %v1246
  %1528 = vst [vmem:[%s5 + $0x48] sm:$0xff] %v1251
  %1529 = vst [vmem:[%s5 + $0x50] sm:$0xff] %v1256
  %1530 = vst [vmem:[%s5 + $0x58] sm:$0xff] %v1261
  %1531 = vst [vmem:[%s5 + $0x60] sm:$0xff] %v1266
  %1532 = vst [vmem:[%s5 + $0x68] sm:$0xff] %v1271
  %1533 = vst [vmem:[%s5 + $0x70] sm:$0xff] %v1276
  %1534 = vst [vmem:[%s5 + $0x78] sm:$0xff] %v1281
  %1535 = vst [vmem:[%s5 + $0x80] sm:$0xff] %v1286
  %1536 = vst [vmem:[%s5 + $0x88] sm:$0xff] %v1291
  %1537 = vst [vmem:[%s5 + $0x90] sm:$0xff] %v1296
  %1538 = vst [vmem:[%s5 + $0x98] sm:$0xff] %v1301
  %1539 = vst [vmem:[%s5 + $0xa0] sm:$0xff] %v1306
  %1540 = vst [vmem:[%s5 + $0xa8] sm:$0xff] %v1311
  %1541 = vst [vmem:[%s5 + $0xb0] sm:$0xff] %v1316
  %1542 = vst [vmem:[%s5 + $0xb8] sm:$0xff] %v1321
  %1543 = vst [vmem:[%s5 + $0xc0] sm:$0xff] %v1326
  %1544 = vst [vmem:[%s5 + $0xc8] sm:$0xff] %v1331
  %1545 = vst [vmem:[%s5 + $0xd0] sm:$0xff] %v1336
  %1546 = vst [vmem:[%s5 + $0xd8] sm:$0xff] %v1341
  %1547 = vst [vmem:[%s5 + $0xe0] sm:$0xff] %v1346
  %1548 = vst [vmem:[%s5 + $0xe8] sm:$0xff] %v1351
  %1549 = vst [vmem:[%s5 + $0xf0] sm:$0xff] %v1356
  %1550 = vst [vmem:[%s5 + $0xf8] sm:$0xff] %v1361
  %1551 = vst [vmem:[%s5 + $0x100] sm:$0xff] %v1366
  %1552 = vst [vmem:[%s5 + $0x108] sm:$0xff] %v1371
  %1553 = vst [vmem:[%s5 + $0x110] sm:$0xff] %v1376
  %1554 = vst [vmem:[%s5 + $0x118] sm:$0xff] %v1381
  %1555 = vst [vmem:[%s5 + $0x120] sm:$0xff] %v1386
  %1556 = vst [vmem:[%s5 + $0x128] sm:$0xff] %v1391
  %1557 = vst [vmem:[%s5 + $0x130] sm:$0xff] %v1396
  %1558 = vst [vmem:[%s5 + $0x138] sm:$0xff] %v1401
  %1559 = vst [vmem:[%s5 + $0x140] sm:$0xff] %v1406
  %1560 = vst [vmem:[%s5 + $0x148] sm:$0xff] %v1411
  %1561 = vst [vmem:[%s5 + $0x150] sm:$0xff] %v1416
  %1562 = vst [vmem:[%s5 + $0x158] sm:$0xff] %v1421
  %1563 = vst [vmem:[%s5 + $0x160] sm:$0xff] %v1426
  %1564 = vst [vmem:[%s5 + $0x168] sm:$0xff] %v1431
  %1565 = vst [vmem:[%s5 + $0x170] sm:$0xff] %v1436
  %1566 = vst [vmem:[%s5 + $0x178] sm:$0xff] %v1441
  %1567 = vst [vmem:[%s5 + $0x180] sm:$0xff] %v1446
  %1568 = vst [vmem:[%s5 + $0x188] sm:$0xff] %v1451
  %1569 = vst [vmem:[%s5 + $0x190] sm:$0xff] %v1456
  %1570 = vst [vmem:[%s5 + $0x198] sm:$0xff] %v1461
  %1571 = vst [vmem:[%s5 + $0x1a0] sm:$0xff] %v1466
  %1572 = vst [vmem:[%s5 + $0x1a8] sm:$0xff] %v1471
  %1573 = vst [vmem:[%s5 + $0x1b0] sm:$0xff] %v1476
  %1574 = vst [vmem:[%s5 + $0x1b8] sm:$0xff] %v1481
  %1575 = vst [vmem:[%s5 + $0x1c0] sm:$0xff] %v1486
  %1576 = vst [vmem:[%s5 + $0x1c8] sm:$0xff] %v1491
  %1577 = vst [vmem:[%s5 + $0x1d0] sm:$0xff] %v1496
  %1578 = vst [vmem:[%s5 + $0x1d8] sm:$0xff] %v1501
  %1579 = vst [vmem:[%s5 + $0x1e0] sm:$0xff] %v1506
  %1580 = vst [vmem:[%s5 + $0x1e8] sm:$0xff] %v1511
  %1581 = vst [vmem:[%s5 + $0x1f0] sm:$0xff] %v1516
  // Predicated region
  $region22: #{mlp_forward.1} parent=0 // pred_check
    _
  $region23: #{mlp_forward.1} parent=0 // pred_check_branch
    %1583 = sbr.rel (0) target = $region25
  $region24: #{mlp_forward.1} parent=0 // pred_region
    _
  $region25: #{mlp_forward.1} parent=0 // pred_fallthru
    _
  // Predicated region
  $region26: #{mlp_forward.1} parent=0 // pred_check
    _
  $region27: #{mlp_forward.1} parent=0 // pred_check_branch
    %1585 = sbr.rel (0) target = $region29
  $region28: #{mlp_forward.1} parent=0 // pred_region
    _
  $region29: #{mlp_forward.1} parent=0 // pred_fallthru
    _

</llo_original>
